<compile_context>
chip_gen: v5e
topology: v5e:2x2
jax: 0.10.0
libtpu: 0.0.40
codegen_flags: <defaults>
</compile_context>

<pallas_src>
import jax
import jax.numpy as jnp
from jax import lax
from jax.experimental import pallas as pl
from jax.experimental.pallas import tpu as pltpu


def _round_up(x, m):
    return ((x + m - 1) // m) * m


# ------------------------------ fused kernel -------------------------------


def make_fused_kernel(block_num, K, L_true, L_seg, TB, C_pad):
    M = TB * L_seg                              # matmul M dim (multiple of 8)

    def kernel(*refs):
        x_ref = refs[0]
        conv_w = [refs[1 + 3 * d] for d in range(block_num)]       # (K,Cin,Cp)
        conv_s = [refs[1 + 3 * d + 1] for d in range(block_num)]   # (1,Cp)
        conv_b = [refs[1 + 3 * d + 2] for d in range(block_num)]   # (1,Cp)
        base = 1 + 3 * block_num
        lin_w = [refs[base + d] for d in range(block_num)]         # (Cp,Op)
        lin_b_ref = refs[base + block_num]                         # (1,Op)
        o_ref = refs[base + block_num + 1]                         # (1,TB,Op)

        h = x_ref[...]                                             # (M, E) bf16
        # Row index inside each fixed-length sample segment; used to mask the
        # garbage tail rows that the VALID-conv shrinkage leaves behind.
        row_in_seg = lax.broadcasted_iota(jnp.int32, (M, C_pad), 0) % L_seg

        out_acc = jnp.zeros((TB, o_ref.shape[-1]), jnp.float32)
        for d in range(block_num):                                 # static unroll
            w_ref = conv_w[d]                                      # (K,Cin_d,Cp)
            # Tap-accumulated conv: K matmuls accumulated in f32 on the MXU.
            acc = jnp.dot(h, w_ref[0], preferred_element_type=jnp.float32)
            for t in range(1, K):
                h_t = jnp.concatenate(
                    [h[t:, :], jnp.zeros((t, h.shape[1]), h.dtype)], axis=0)
                acc = acc + jnp.dot(h_t, w_ref[t],
                                    preferred_element_type=jnp.float32)
            # Fused conv-bias + eval-mode BN + ReLU epilogue (lane dense, f32).
            y = jnp.maximum(acc * conv_s[d][...] + conv_b[d][...], 0.0)
            # Block `d` finishes at this depth: fused AdaptiveMaxPool1d(1) over
            # the valid rows of every segment, then its slice of the final
            # Linear (zero rows kill all other / finished / padded lanes).
            l_valid = L_true - (d + 1) * (K - 1)
            y_m = jnp.where(row_in_seg < l_valid, y, 0.0)
            pooled = jnp.max(y_m.reshape(TB, L_seg, C_pad), axis=1)  # (TB,Cp)
            out_acc = out_acc + jnp.dot(pooled.astype(jnp.bfloat16),
                                        lin_w[d][...],
                                        preferred_element_type=jnp.float32)
            if d + 1 < block_num:
                h = y.astype(jnp.bfloat16)        # carried padded 128-lane tile
        o_ref[0] = (out_acc + lin_b_ref[...]).astype(o_ref.dtype)

    return kernel


def drug_representation(embed, conv_packs, lin_ws, lin_b_pad, tokens,
                        block_num, K, E):
    B, L = tokens.shape
    assert L > block_num * (K - 1), "sequence too short for stacked VALID convs"
    L_seg = _round_up(L, 8)                       # fixed per-sample segment len
    lout0 = L - (K - 1)
    # Batch tile: aim for M = TB*Lout >= 128, but keep >= 2 grid steps when the
    # batch allows so v7x's two TensorCores both get work.
    tb_target = max(1, pl.cdiv(128, lout0))
    TB = int(min(tb_target, max(1, B // 2)))
    n_steps = pl.cdiv(B, TB)
    B_pad = TB * n_steps

    C_pad = conv_packs[0][1].shape[-1]
    O_pad = lin_b_pad.shape[-1]

    # Embedding gather is glue (plain JAX); emit bf16 (kernel consumes bf16).
    x = jnp.take(embed, tokens, axis=0).astype(jnp.bfloat16)       # (B, L, E)
    x = jnp.pad(x, ((0, B_pad - B), (0, L_seg - L), (0, 0)))
    x2 = x.reshape(B_pad * L_seg, E)                               # 2-D segments

    operands = [x2]
    in_specs = [pl.BlockSpec((TB * L_seg, E), lambda b: (b, 0))]
    for (Wd, Sd, Bd) in conv_packs:               # resident, constant index maps
        operands += [Wd, Sd, Bd]
        in_specs += [pl.BlockSpec(Wd.shape, lambda b: (0, 0, 0)),
                     pl.BlockSpec(Sd.shape, lambda b: (0, 0)),
                     pl.BlockSpec(Bd.shape, lambda b: (0, 0))]
    for Wl in lin_ws:
        operands.append(Wl)
        in_specs.append(pl.BlockSpec(Wl.shape, lambda b: (0, 0)))
    operands.append(lin_b_pad)
    in_specs.append(pl.BlockSpec(lin_b_pad.shape, lambda b: (0, 0)))

    out = pl.pallas_call(
        make_fused_kernel(block_num, K, L, L_seg, TB, C_pad),
        out_shape=jax.ShapeDtypeStruct((n_steps, TB, O_pad), jnp.float32),
        grid=(n_steps,),
        in_specs=in_specs,
        out_specs=pl.BlockSpec((1, TB, O_pad), lambda b: (b, 0, 0)),
        compiler_params=pltpu.CompilerParams(
            dimension_semantics=("parallel",),
            vmem_limit_bytes=32 * 1024 * 1024),
    )(*operands)
    return out.reshape(B_pad, O_pad)[:B, :E]                       # (B, E)


# ------------------------------ parameters ---------------------------------


def init_params(key, block_num, vocab_size, E, K=3, eps=1e-5):
    key, k = jax.random.split(key)
    embed = 0.1 * jax.random.normal(k, (vocab_size, E), jnp.float32)
    embed = embed.at[0].set(0.0)                  # padding_idx=0

    raw_blocks = []
    for bi in range(block_num):
        layers = []
        for _ in range(bi + 1):                   # StackCNN(bi+1, E, E, 3)
            key, kw, kb, kg, kbe, km, kv = jax.random.split(key, 7)
            w = 0.05 * jax.random.normal(kw, (E, E, K), jnp.float32)  # (O,I,K)
            b_conv = 0.05 * jax.random.normal(kb, (E,), jnp.float32)
            gamma = 1.0 + 0.1 * jax.random.normal(kg, (E,), jnp.float32)
            beta = 0.1 * jax.random.normal(kbe, (E,), jnp.float32)
            mean = 0.1 * jax.random.normal(km, (E,), jnp.float32)
            var = jnp.abs(jax.random.normal(kv, (E,), jnp.float32)) + 0.5
            # Fold conv bias + eval-mode BN into per-channel scale / bias.
            scale = gamma / jnp.sqrt(var + eps)
            bias = beta + scale * (b_conv - mean)
            layers.append((w, scale, bias))
        raw_blocks.append(layers)

    key, kw, kb = jax.random.split(key, 3)
    lin_w = 0.05 * jax.random.normal(kw, (block_num * E, E), jnp.float32)
    lin_b = 0.05 * jax.random.normal(kb, (1, E), jnp.float32)
    return embed, raw_blocks, lin_w, lin_b


def pack_params(raw_blocks, lin_w, lin_b, block_num, K, E):
    """Per-depth horizontally fused, per-tap split, 128-lane padded weights.

    Lane order at depth d: active block i sits at slot p = block_num-1-i, so
    the block that FINISHES at depth d occupies the last E active lanes and
    the carried activation keeps a consistent lane layout across depths.
    """
    C_pad = _round_up(block_num * E, 128)
    E_out = lin_w.shape[1]
    O_pad = _round_up(E_out, 128)

    conv_packs = []
    for d in range(block_num):
        cin = E if d == 0 else C_pad
        W = jnp.zeros((K, cin, C_pad), jnp.float32)
        scale = jnp.zeros((1, C_pad), jnp.float32)
        bias = jnp.zeros((1, C_pad), jnp.float32)
        for i in range(d, block_num):             # blocks still active at depth d
            p = block_num - 1 - i
            w_oik, s_i, b_i = raw_blocks[i][d]
            w_kio = jnp.transpose(w_oik, (2, 1, 0))           # (K, Cin, Cout)
            c0 = p * E
            if d == 0:
                W = W.at[:, :, c0:c0 + E].set(w_kio)          # shared input x
            else:
                W = W.at[:, c0:c0 + E, c0:c0 + E].set(w_kio)  # block-diagonal
            scale = scale.at[0, c0:c0 + E].set(s_i)
            bias = bias.at[0, c0:c0 + E].set(b_i)
        conv_packs.append((W.astype(jnp.bfloat16), scale, bias))

    lin_ws = []
    for d in range(block_num):
        p = block_num - 1 - d                     # block d's lane slot at depth d
        Wl = jnp.zeros((C_pad, O_pad), jnp.float32)
        Wl = Wl.at[p * E:(p + 1) * E, :E_out].set(lin_w[d * E:(d + 1) * E, :])
        lin_ws.append(Wl.astype(jnp.bfloat16))

    lin_b_pad = jnp.zeros((1, O_pad), jnp.float32)
    lin_b_pad = lin_b_pad.at[:, :E_out].set(lin_b)
    return conv_packs, lin_ws, lin_b_pad


# -------------------------- plain-JAX reference -----------------------------


def reference_forward(embed, raw_blocks, lin_w, lin_b, tokens):
    x = jnp.take(embed, tokens, axis=0)                       # (B, L, E)
    feats = []
    for layers in raw_blocks:
        h = x
        for (w, scale, bias) in layers:
            y = lax.conv_general_dilated(
                h, w, window_strides=(1,), padding="VALID",
                dimension_numbers=("NWC", "OIW", "NWC"))
            h = jnp.maximum(y * scale + bias, 0.0)
        feats.append(jnp.max(h, axis=1))                      # AdaptiveMaxPool1d(1)
    cat = jnp.concatenate(feats, axis=-1)
    return cat @ lin_w + lin_b


# --------------------------------- main -------------------------------------

if __name__ == "__main__":
    B, L = 2, 16
    block_num, vocab_size, E, K = 3, 32, 32, 3

    key = jax.random.PRNGKey(0)
    kp, kx = jax.random.split(key)
    embed, raw_blocks, lin_w, lin_b = init_params(kp, block_num, vocab_size, E, K)
    conv_packs, lin_ws, lin_b_pad = pack_params(raw_blocks, lin_w, lin_b,
                                                block_num, K, E)
    tokens = jax.random.randint(kx, (B, L), 0, vocab_size, dtype=jnp.int32)

    out = drug_representation(embed, conv_packs, lin_ws, lin_b_pad, tokens,
                              block_num, K, E)
    out = jax.block_until_ready(out)
    assert out.shape == (B, E), out.shape
    assert out.dtype == jnp.float32

    ref = reference_forward(embed, raw_blocks, lin_w, lin_b, tokens)
    err = float(jnp.max(jnp.abs(out - ref)))
    assert err < 5e-2, f"mismatch vs reference: max abs err = {err}"

    print("KERNEL_OK")
</pallas_src>

<mosaic_0001>
module attributes {stable_mosaic.version = 11 : i64} {
  func.func @kernel(%arg0: i32, %arg1: memref<16x32xbf16, #tpu.memory_space<vmem>>, %arg2: memref<3x32x128xbf16, #tpu.memory_space<vmem>>, %arg3: memref<1x128xf32, #tpu.memory_space<vmem>>, %arg4: memref<1x128xf32, #tpu.memory_space<vmem>>, %arg5: memref<3x128x128xbf16, #tpu.memory_space<vmem>>, %arg6: memref<1x128xf32, #tpu.memory_space<vmem>>, %arg7: memref<1x128xf32, #tpu.memory_space<vmem>>, %arg8: memref<3x128x128xbf16, #tpu.memory_space<vmem>>, %arg9: memref<1x128xf32, #tpu.memory_space<vmem>>, %arg10: memref<1x128xf32, #tpu.memory_space<vmem>>, %arg11: memref<128x128xbf16, #tpu.memory_space<vmem>>, %arg12: memref<128x128xbf16, #tpu.memory_space<vmem>>, %arg13: memref<128x128xbf16, #tpu.memory_space<vmem>>, %arg14: memref<1x128xf32, #tpu.memory_space<vmem>>, %arg15: memref<1x1x128xf32, #tpu.memory_space<vmem>>) attributes {dimension_semantics = [#tpu.dimension_semantics<parallel>], iteration_bounds = array<i64: 2>, scalar_prefetch = 0 : i64, scratch_operands = 0 : i64, tpu.core_type = #tpu.core_type<tc>, window_params = [{transform_indices = @transform_0, window_bounds = array<i64: 16, 32>}, {pipeline_mode = #tpu.pipeline_mode<synchronous>, transform_indices = @transform_1, window_bounds = array<i64: 3, 32, 128>}, {pipeline_mode = #tpu.pipeline_mode<synchronous>, transform_indices = @transform_2, window_bounds = array<i64: 1, 128>}, {pipeline_mode = #tpu.pipeline_mode<synchronous>, transform_indices = @transform_3, window_bounds = array<i64: 1, 128>}, {pipeline_mode = #tpu.pipeline_mode<synchronous>, transform_indices = @transform_4, window_bounds = array<i64: 3, 128, 128>}, {pipeline_mode = #tpu.pipeline_mode<synchronous>, transform_indices = @transform_5, window_bounds = array<i64: 1, 128>}, {pipeline_mode = #tpu.pipeline_mode<synchronous>, transform_indices = @transform_6, window_bounds = array<i64: 1, 128>}, {pipeline_mode = #tpu.pipeline_mode<synchronous>, transform_indices = @transform_7, window_bounds = array<i64: 3, 128, 128>}, {pipeline_mode = #tpu.pipeline_mode<synchronous>, transform_indices = @transform_8, window_bounds = array<i64: 1, 128>}, {pipeline_mode = #tpu.pipeline_mode<synchronous>, transform_indices = @transform_9, window_bounds = array<i64: 1, 128>}, {pipeline_mode = #tpu.pipeline_mode<synchronous>, transform_indices = @transform_10, window_bounds = array<i64: 128, 128>}, {pipeline_mode = #tpu.pipeline_mode<synchronous>, transform_indices = @transform_11, window_bounds = array<i64: 128, 128>}, {pipeline_mode = #tpu.pipeline_mode<synchronous>, transform_indices = @transform_12, window_bounds = array<i64: 128, 128>}, {pipeline_mode = #tpu.pipeline_mode<synchronous>, transform_indices = @transform_13, window_bounds = array<i64: 1, 128>}, {transform_indices = @transform_14, window_bounds = array<i64: 1, 1, 128>}]} {
    %c0 = arith.constant 0 : index
    %c0_0 = arith.constant 0 : index
    %0 = vector.load %arg1[%c0, %c0_0] : memref<16x32xbf16, #tpu.memory_space<vmem>>, vector<16x32xbf16>
    %1 = tpu.iota {dimensions = array<i32: 0>} : vector<16x128xi32>
    %c16_i32 = arith.constant 16 : i32
    %c0_i32 = arith.constant 0 : i32
    %2 = arith.cmpi eq, %c16_i32, %c0_i32 : i32
    %c1_i32 = arith.constant 1 : i32
    %3 = arith.select %2, %c1_i32, %c16_i32 : i32
    %4 = vector.broadcast %3 : i32 to vector<16x128xi32>
    %5 = arith.remsi %1, %4 : vector<16x128xi32>
    %c0_i32_1 = arith.constant 0 : i32
    %6 = vector.broadcast %c0_i32_1 : i32 to vector<16x128xi32>
    %7 = arith.cmpi ne, %5, %6 : vector<16x128xi32>
    %c0_i32_2 = arith.constant 0 : i32
    %8 = vector.broadcast %c0_i32_2 : i32 to vector<16x128xi32>
    %9 = arith.cmpi slt, %5, %8 : vector<16x128xi32>
    %c0_i32_3 = arith.constant 0 : i32
    %10 = arith.cmpi slt, %3, %c0_i32_3 : i32
    %11 = vector.broadcast %10 : i1 to vector<16x128xi1>
    %12 = vector.broadcast %11 : vector<16x128xi1> to vector<16x128xi1>
    %13 = arith.xori %9, %12 : vector<16x128xi1>
    %14 = arith.andi %13, %7 : vector<16x128xi1>
    %15 = vector.broadcast %3 : i32 to vector<16x128xi32>
    %16 = arith.addi %5, %15 : vector<16x128xi32>
    %17 = arith.select %14, %16, %5 : vector<16x128xi1>, vector<16x128xi32>
    %cst = arith.constant 0.000000e+00 : f32
    %18 = vector.broadcast %cst : f32 to vector<1x128xf32>
    %c0_4 = arith.constant 0 : index
    %c0_5 = arith.constant 0 : index
    %c0_6 = arith.constant 0 : index
    %19 = vector.load %arg2[%c0_4, %c0_5, %c0_6] : memref<3x32x128xbf16, #tpu.memory_space<vmem>>, vector<1x32x128xbf16>
    %20 = vector.shape_cast %19 : vector<1x32x128xbf16> to vector<32x128xbf16>
    %cst_7 = arith.constant dense<0.000000e+00> : vector<16x128xf32>
    %21 = tpu.matmul %0, %20, %cst_7 {dimension_numbers = #tpu.dot_dimension_numbers<[1], [0], [0], [1], [0, 0, 1, 1], [], []>} : vector<16x32xbf16>, vector<32x128xbf16>, vector<16x128xf32> -> vector<16x128xf32>
    %22 = vector.extract_strided_slice %0 {offsets = [1, 0], sizes = [15, 32], strides = [1, 1]} : vector<16x32xbf16> to vector<15x32xbf16>
    %cst_8 = arith.constant 0.000000e+00 : bf16
    %23 = vector.broadcast %cst_8 : bf16 to vector<1x32xbf16>
    %24 = tpu.concatenate %22, %23 in 0 : vector<15x32xbf16>, vector<1x32xbf16> -> vector<16x32xbf16>
    %c1 = arith.constant 1 : index
    %c0_9 = arith.constant 0 : index
    %c0_10 = arith.constant 0 : index
    %25 = vector.load %arg2[%c1, %c0_9, %c0_10] : memref<3x32x128xbf16, #tpu.memory_space<vmem>>, vector<1x32x128xbf16>
    %26 = vector.shape_cast %25 : vector<1x32x128xbf16> to vector<32x128xbf16>
    %cst_11 = arith.constant dense<0.000000e+00> : vector<16x128xf32>
    %27 = tpu.matmul %24, %26, %cst_11 {dimension_numbers = #tpu.dot_dimension_numbers<[1], [0], [0], [1], [0, 0, 1, 1], [], []>} : vector<16x32xbf16>, vector<32x128xbf16>, vector<16x128xf32> -> vector<16x128xf32>
    %28 = arith.addf %21, %27 : vector<16x128xf32>
    %29 = vector.extract_strided_slice %0 {offsets = [2, 0], sizes = [14, 32], strides = [1, 1]} : vector<16x32xbf16> to vector<14x32xbf16>
    %cst_12 = arith.constant 0.000000e+00 : bf16
    %30 = vector.broadcast %cst_12 : bf16 to vector<2x32xbf16>
    %31 = tpu.concatenate %29, %30 in 0 : vector<14x32xbf16>, vector<2x32xbf16> -> vector<16x32xbf16>
    %c2 = arith.constant 2 : index
    %c0_13 = arith.constant 0 : index
    %c0_14 = arith.constant 0 : index
    %32 = vector.load %arg2[%c2, %c0_13, %c0_14] : memref<3x32x128xbf16, #tpu.memory_space<vmem>>, vector<1x32x128xbf16>
    %33 = vector.shape_cast %32 : vector<1x32x128xbf16> to vector<32x128xbf16>
    %cst_15 = arith.constant dense<0.000000e+00> : vector<16x128xf32>
    %34 = tpu.matmul %31, %33, %cst_15 {dimension_numbers = #tpu.dot_dimension_numbers<[1], [0], [0], [1], [0, 0, 1, 1], [], []>} : vector<16x32xbf16>, vector<32x128xbf16>, vector<16x128xf32> -> vector<16x128xf32>
    %35 = arith.addf %28, %34 : vector<16x128xf32>
    %c0_16 = arith.constant 0 : index
    %c0_17 = arith.constant 0 : index
    %36 = vector.load %arg3[%c0_16, %c0_17] : memref<1x128xf32, #tpu.memory_space<vmem>>, vector<1x128xf32>
    %37 = vector.broadcast %36 : vector<1x128xf32> to vector<16x128xf32>
    %38 = arith.mulf %35, %37 : vector<16x128xf32>
    %c0_18 = arith.constant 0 : index
    %c0_19 = arith.constant 0 : index
    %39 = vector.load %arg4[%c0_18, %c0_19] : memref<1x128xf32, #tpu.memory_space<vmem>>, vector<1x128xf32>
    %40 = vector.broadcast %39 : vector<1x128xf32> to vector<16x128xf32>
    %41 = arith.addf %38, %40 : vector<16x128xf32>
    %cst_20 = arith.constant 0.000000e+00 : f32
    %42 = vector.broadcast %cst_20 : f32 to vector<16x128xf32>
    %43 = arith.maximumf %41, %42 : vector<16x128xf32>
    %c14_i32 = arith.constant 14 : i32
    %44 = vector.broadcast %c14_i32 : i32 to vector<16x128xi32>
    %45 = arith.cmpi slt, %17, %44 : vector<16x128xi32>
    %cst_21 = arith.constant 0.000000e+00 : f32
    %46 = vector.broadcast %cst_21 : f32 to vector<16x128xf32>
    %47 = arith.select %45, %43, %46 : vector<16x128xi1>, vector<16x128xf32>
    %48 = vector.shape_cast %47 : vector<16x128xf32> to vector<1x16x128xf32>
    %cst_22 = arith.constant dense<0xFF800000> : vector<1x128xf32>
    %49 = vector.multi_reduction <maximumf>, %48, %cst_22 [1] : vector<1x16x128xf32> to vector<1x128xf32>
    %50 = arith.truncf %49 : vector<1x128xf32> to vector<1x128xbf16>
    %c0_23 = arith.constant 0 : index
    %c0_24 = arith.constant 0 : index
    %51 = vector.load %arg11[%c0_23, %c0_24] : memref<128x128xbf16, #tpu.memory_space<vmem>>, vector<128x128xbf16>
    %cst_25 = arith.constant dense<0.000000e+00> : vector<1x128xf32>
    %52 = tpu.matmul %50, %51, %cst_25 {dimension_numbers = #tpu.dot_dimension_numbers<[1], [0], [0], [1], [0, 0, 1, 1], [], []>} : vector<1x128xbf16>, vector<128x128xbf16>, vector<1x128xf32> -> vector<1x128xf32>
    %53 = arith.addf %18, %52 : vector<1x128xf32>
    %54 = arith.truncf %43 : vector<16x128xf32> to vector<16x128xbf16>
    %c0_26 = arith.constant 0 : index
    %c0_27 = arith.constant 0 : index
    %c0_28 = arith.constant 0 : index
    %55 = vector.load %arg5[%c0_26, %c0_27, %c0_28] : memref<3x128x128xbf16, #tpu.memory_space<vmem>>, vector<1x128x128xbf16>
    %56 = vector.shape_cast %55 : vector<1x128x128xbf16> to vector<128x128xbf16>
    %cst_29 = arith.constant dense<0.000000e+00> : vector<16x128xf32>
    %57 = tpu.matmul %54, %56, %cst_29 {dimension_numbers = #tpu.dot_dimension_numbers<[1], [0], [0], [1], [0, 0, 1, 1], [], []>} : vector<16x128xbf16>, vector<128x128xbf16>, vector<16x128xf32> -> vector<16x128xf32>
    %58 = vector.extract_strided_slice %54 {offsets = [1, 0], sizes = [15, 128], strides = [1, 1]} : vector<16x128xbf16> to vector<15x128xbf16>
    %cst_30 = arith.constant 0.000000e+00 : bf16
    %59 = vector.broadcast %cst_30 : bf16 to vector<1x128xbf16>
    %60 = tpu.concatenate %58, %59 in 0 : vector<15x128xbf16>, vector<1x128xbf16> -> vector<16x128xbf16>
    %c1_31 = arith.constant 1 : index
    %c0_32 = arith.constant 0 : index
    %c0_33 = arith.constant 0 : index
    %61 = vector.load %arg5[%c1_31, %c0_32, %c0_33] : memref<3x128x128xbf16, #tpu.memory_space<vmem>>, vector<1x128x128xbf16>
    %62 = vector.shape_cast %61 : vector<1x128x128xbf16> to vector<128x128xbf16>
    %cst_34 = arith.constant dense<0.000000e+00> : vector<16x128xf32>
    %63 = tpu.matmul %60, %62, %cst_34 {dimension_numbers = #tpu.dot_dimension_numbers<[1], [0], [0], [1], [0, 0, 1, 1], [], []>} : vector<16x128xbf16>, vector<128x128xbf16>, vector<16x128xf32> -> vector<16x128xf32>
    %64 = arith.addf %57, %63 : vector<16x128xf32>
    %65 = vector.extract_strided_slice %54 {offsets = [2, 0], sizes = [14, 128], strides = [1, 1]} : vector<16x128xbf16> to vector<14x128xbf16>
    %cst_35 = arith.constant 0.000000e+00 : bf16
    %66 = vector.broadcast %cst_35 : bf16 to vector<2x128xbf16>
    %67 = tpu.concatenate %65, %66 in 0 : vector<14x128xbf16>, vector<2x128xbf16> -> vector<16x128xbf16>
    %c2_36 = arith.constant 2 : index
    %c0_37 = arith.constant 0 : index
    %c0_38 = arith.constant 0 : index
    %68 = vector.load %arg5[%c2_36, %c0_37, %c0_38] : memref<3x128x128xbf16, #tpu.memory_space<vmem>>, vector<1x128x128xbf16>
    %69 = vector.shape_cast %68 : vector<1x128x128xbf16> to vector<128x128xbf16>
    %cst_39 = arith.constant dense<0.000000e+00> : vector<16x128xf32>
    %70 = tpu.matmul %67, %69, %cst_39 {dimension_numbers = #tpu.dot_dimension_numbers<[1], [0], [0], [1], [0, 0, 1, 1], [], []>} : vector<16x128xbf16>, vector<128x128xbf16>, vector<16x128xf32> -> vector<16x128xf32>
    %71 = arith.addf %64, %70 : vector<16x128xf32>
    %c0_40 = arith.constant 0 : index
    %c0_41 = arith.constant 0 : index
    %72 = vector.load %arg6[%c0_40, %c0_41] : memref<1x128xf32, #tpu.memory_space<vmem>>, vector<1x128xf32>
    %73 = vector.broadcast %72 : vector<1x128xf32> to vector<16x128xf32>
    %74 = arith.mulf %71, %73 : vector<16x128xf32>
    %c0_42 = arith.constant 0 : index
    %c0_43 = arith.constant 0 : index
    %75 = vector.load %arg7[%c0_42, %c0_43] : memref<1x128xf32, #tpu.memory_space<vmem>>, vector<1x128xf32>
    %76 = vector.broadcast %75 : vector<1x128xf32> to vector<16x128xf32>
    %77 = arith.addf %74, %76 : vector<16x128xf32>
    %cst_44 = arith.constant 0.000000e+00 : f32
    %78 = vector.broadcast %cst_44 : f32 to vector<16x128xf32>
    %79 = arith.maximumf %77, %78 : vector<16x128xf32>
    %c12_i32 = arith.constant 12 : i32
    %80 = vector.broadcast %c12_i32 : i32 to vector<16x128xi32>
    %81 = arith.cmpi slt, %17, %80 : vector<16x128xi32>
    %cst_45 = arith.constant 0.000000e+00 : f32
    %82 = vector.broadcast %cst_45 : f32 to vector<16x128xf32>
    %83 = arith.select %81, %79, %82 : vector<16x128xi1>, vector<16x128xf32>
    %84 = vector.shape_cast %83 : vector<16x128xf32> to vector<1x16x128xf32>
    %cst_46 = arith.constant dense<0xFF800000> : vector<1x128xf32>
    %85 = vector.multi_reduction <maximumf>, %84, %cst_46 [1] : vector<1x16x128xf32> to vector<1x128xf32>
    %86 = arith.truncf %85 : vector<1x128xf32> to vector<1x128xbf16>
    %c0_47 = arith.constant 0 : index
    %c0_48 = arith.constant 0 : index
    %87 = vector.load %arg12[%c0_47, %c0_48] : memref<128x128xbf16, #tpu.memory_space<vmem>>, vector<128x128xbf16>
    %cst_49 = arith.constant dense<0.000000e+00> : vector<1x128xf32>
    %88 = tpu.matmul %86, %87, %cst_49 {dimension_numbers = #tpu.dot_dimension_numbers<[1], [0], [0], [1], [0, 0, 1, 1], [], []>} : vector<1x128xbf16>, vector<128x128xbf16>, vector<1x128xf32> -> vector<1x128xf32>
    %89 = arith.addf %53, %88 : vector<1x128xf32>
    %90 = arith.truncf %79 : vector<16x128xf32> to vector<16x128xbf16>
    %c0_50 = arith.constant 0 : index
    %c0_51 = arith.constant 0 : index
    %c0_52 = arith.constant 0 : index
    %91 = vector.load %arg8[%c0_50, %c0_51, %c0_52] : memref<3x128x128xbf16, #tpu.memory_space<vmem>>, vector<1x128x128xbf16>
    %92 = vector.shape_cast %91 : vector<1x128x128xbf16> to vector<128x128xbf16>
    %cst_53 = arith.constant dense<0.000000e+00> : vector<16x128xf32>
    %93 = tpu.matmul %90, %92, %cst_53 {dimension_numbers = #tpu.dot_dimension_numbers<[1], [0], [0], [1], [0, 0, 1, 1], [], []>} : vector<16x128xbf16>, vector<128x128xbf16>, vector<16x128xf32> -> vector<16x128xf32>
    %94 = vector.extract_strided_slice %90 {offsets = [1, 0], sizes = [15, 128], strides = [1, 1]} : vector<16x128xbf16> to vector<15x128xbf16>
    %cst_54 = arith.constant 0.000000e+00 : bf16
    %95 = vector.broadcast %cst_54 : bf16 to vector<1x128xbf16>
    %96 = tpu.concatenate %94, %95 in 0 : vector<15x128xbf16>, vector<1x128xbf16> -> vector<16x128xbf16>
    %c1_55 = arith.constant 1 : index
    %c0_56 = arith.constant 0 : index
    %c0_57 = arith.constant 0 : index
    %97 = vector.load %arg8[%c1_55, %c0_56, %c0_57] : memref<3x128x128xbf16, #tpu.memory_space<vmem>>, vector<1x128x128xbf16>
    %98 = vector.shape_cast %97 : vector<1x128x128xbf16> to vector<128x128xbf16>
    %cst_58 = arith.constant dense<0.000000e+00> : vector<16x128xf32>
    %99 = tpu.matmul %96, %98, %cst_58 {dimension_numbers = #tpu.dot_dimension_numbers<[1], [0], [0], [1], [0, 0, 1, 1], [], []>} : vector<16x128xbf16>, vector<128x128xbf16>, vector<16x128xf32> -> vector<16x128xf32>
    %100 = arith.addf %93, %99 : vector<16x128xf32>
    %101 = vector.extract_strided_slice %90 {offsets = [2, 0], sizes = [14, 128], strides = [1, 1]} : vector<16x128xbf16> to vector<14x128xbf16>
    %cst_59 = arith.constant 0.000000e+00 : bf16
    %102 = vector.broadcast %cst_59 : bf16 to vector<2x128xbf16>
    %103 = tpu.concatenate %101, %102 in 0 : vector<14x128xbf16>, vector<2x128xbf16> -> vector<16x128xbf16>
    %c2_60 = arith.constant 2 : index
    %c0_61 = arith.constant 0 : index
    %c0_62 = arith.constant 0 : index
    %104 = vector.load %arg8[%c2_60, %c0_61, %c0_62] : memref<3x128x128xbf16, #tpu.memory_space<vmem>>, vector<1x128x128xbf16>
    %105 = vector.shape_cast %104 : vector<1x128x128xbf16> to vector<128x128xbf16>
    %cst_63 = arith.constant dense<0.000000e+00> : vector<16x128xf32>
    %106 = tpu.matmul %103, %105, %cst_63 {dimension_numbers = #tpu.dot_dimension_numbers<[1], [0], [0], [1], [0, 0, 1, 1], [], []>} : vector<16x128xbf16>, vector<128x128xbf16>, vector<16x128xf32> -> vector<16x128xf32>
    %107 = arith.addf %100, %106 : vector<16x128xf32>
    %c0_64 = arith.constant 0 : index
    %c0_65 = arith.constant 0 : index
    %108 = vector.load %arg9[%c0_64, %c0_65] : memref<1x128xf32, #tpu.memory_space<vmem>>, vector<1x128xf32>
    %109 = vector.broadcast %108 : vector<1x128xf32> to vector<16x128xf32>
    %110 = arith.mulf %107, %109 : vector<16x128xf32>
    %c0_66 = arith.constant 0 : index
    %c0_67 = arith.constant 0 : index
    %111 = vector.load %arg10[%c0_66, %c0_67] : memref<1x128xf32, #tpu.memory_space<vmem>>, vector<1x128xf32>
    %112 = vector.broadcast %111 : vector<1x128xf32> to vector<16x128xf32>
    %113 = arith.addf %110, %112 : vector<16x128xf32>
    %cst_68 = arith.constant 0.000000e+00 : f32
    %114 = vector.broadcast %cst_68 : f32 to vector<16x128xf32>
    %115 = arith.maximumf %113, %114 : vector<16x128xf32>
    %c10_i32 = arith.constant 10 : i32
    %116 = vector.broadcast %c10_i32 : i32 to vector<16x128xi32>
    %117 = arith.cmpi slt, %17, %116 : vector<16x128xi32>
    %cst_69 = arith.constant 0.000000e+00 : f32
    %118 = vector.broadcast %cst_69 : f32 to vector<16x128xf32>
    %119 = arith.select %117, %115, %118 : vector<16x128xi1>, vector<16x128xf32>
    %120 = vector.shape_cast %119 : vector<16x128xf32> to vector<1x16x128xf32>
    %cst_70 = arith.constant dense<0xFF800000> : vector<1x128xf32>
    %121 = vector.multi_reduction <maximumf>, %120, %cst_70 [1] : vector<1x16x128xf32> to vector<1x128xf32>
    %122 = arith.truncf %121 : vector<1x128xf32> to vector<1x128xbf16>
    %c0_71 = arith.constant 0 : index
    %c0_72 = arith.constant 0 : index
    %123 = vector.load %arg13[%c0_71, %c0_72] : memref<128x128xbf16, #tpu.memory_space<vmem>>, vector<128x128xbf16>
    %cst_73 = arith.constant dense<0.000000e+00> : vector<1x128xf32>
    %124 = tpu.matmul %122, %123, %cst_73 {dimension_numbers = #tpu.dot_dimension_numbers<[1], [0], [0], [1], [0, 0, 1, 1], [], []>} : vector<1x128xbf16>, vector<128x128xbf16>, vector<1x128xf32> -> vector<1x128xf32>
    %125 = arith.addf %89, %124 : vector<1x128xf32>
    %c0_74 = arith.constant 0 : index
    %c0_75 = arith.constant 0 : index
    %126 = vector.load %arg14[%c0_74, %c0_75] : memref<1x128xf32, #tpu.memory_space<vmem>>, vector<1x128xf32>
    %127 = arith.addf %125, %126 : vector<1x128xf32>
    %c0_76 = arith.constant 0 : index
    %c0_77 = arith.constant 0 : index
    %c0_78 = arith.constant 0 : index
    %128 = vector.load %arg15[%c0_76, %c0_77, %c0_78] : memref<1x1x128xf32, #tpu.memory_space<vmem>>, vector<1x1x128xf32>
    %129 = vector.shape_cast %128 : vector<1x1x128xf32> to vector<1x128xf32>
    %130 = vector.shape_cast %127 : vector<1x128xf32> to vector<1x1x128xf32>
    tpu.vector_store %arg15[%c0_76, %c0_77, %c0_78], %130 {strides = array<i32>} : memref<1x1x128xf32, #tpu.memory_space<vmem>>, vector<1x1x128xf32>,
    return
  }
  func.func @transform_0(%arg0: i32) -> (i32, i32) {
    %c0_i32 = arith.constant 0 : i32
    %c0_i32_0 = arith.constant 0 : i32
    return %arg0, %c0_i32 : i32, i32
  }
  func.func @transform_1(%arg0: i32) -> (i32, i32, i32) {
    %c0_i32 = arith.constant 0 : i32
    %c0_i32_0 = arith.constant 0 : i32
    %c0_i32_1 = arith.constant 0 : i32
    %c0_i32_2 = arith.constant 0 : i32
    return %c0_i32, %c0_i32_0, %c0_i32_1 : i32, i32, i32
  }
  func.func @transform_2(%arg0: i32) -> (i32, i32) {
    %c0_i32 = arith.constant 0 : i32
    %c0_i32_0 = arith.constant 0 : i32
    %c0_i32_1 = arith.constant 0 : i32
    return %c0_i32, %c0_i32_0 : i32, i32
  }
  func.func @transform_3(%arg0: i32) -> (i32, i32) {
    %c0_i32 = arith.constant 0 : i32
    %c0_i32_0 = arith.constant 0 : i32
    %c0_i32_1 = arith.constant 0 : i32
    return %c0_i32, %c0_i32_0 : i32, i32
  }
  func.func @transform_4(%arg0: i32) -> (i32, i32, i32) {
    %c0_i32 = arith.constant 0 : i32
    %c0_i32_0 = arith.constant 0 : i32
    %c0_i32_1 = arith.constant 0 : i32
    %c0_i32_2 = arith.constant 0 : i32
    return %c0_i32, %c0_i32_0, %c0_i32_1 : i32, i32, i32
  }
  func.func @transform_5(%arg0: i32) -> (i32, i32) {
    %c0_i32 = arith.constant 0 : i32
    %c0_i32_0 = arith.constant 0 : i32
    %c0_i32_1 = arith.constant 0 : i32
    return %c0_i32, %c0_i32_0 : i32, i32
  }
  func.func @transform_6(%arg0: i32) -> (i32, i32) {
    %c0_i32 = arith.constant 0 : i32
    %c0_i32_0 = arith.constant 0 : i32
    %c0_i32_1 = arith.constant 0 : i32
    return %c0_i32, %c0_i32_0 : i32, i32
  }
  func.func @transform_7(%arg0: i32) -> (i32, i32, i32) {
    %c0_i32 = arith.constant 0 : i32
    %c0_i32_0 = arith.constant 0 : i32
    %c0_i32_1 = arith.constant 0 : i32
    %c0_i32_2 = arith.constant 0 : i32
    return %c0_i32, %c0_i32_0, %c0_i32_1 : i32, i32, i32
  }
  func.func @transform_8(%arg0: i32) -> (i32, i32) {
    %c0_i32 = arith.constant 0 : i32
    %c0_i32_0 = arith.constant 0 : i32
    %c0_i32_1 = arith.constant 0 : i32
    return %c0_i32, %c0_i32_0 : i32, i32
  }
  func.func @transform_9(%arg0: i32) -> (i32, i32) {
    %c0_i32 = arith.constant 0 : i32
    %c0_i32_0 = arith.constant 0 : i32
    %c0_i32_1 = arith.constant 0 : i32
    return %c0_i32, %c0_i32_0 : i32, i32
  }
  func.func @transform_10(%arg0: i32) -> (i32, i32) {
    %c0_i32 = arith.constant 0 : i32
    %c0_i32_0 = arith.constant 0 : i32
    %c0_i32_1 = arith.constant 0 : i32
    return %c0_i32, %c0_i32_0 : i32, i32
  }
  func.func @transform_11(%arg0: i32) -> (i32, i32) {
    %c0_i32 = arith.constant 0 : i32
    %c0_i32_0 = arith.constant 0 : i32
    %c0_i32_1 = arith.constant 0 : i32
    return %c0_i32, %c0_i32_0 : i32, i32
  }
  func.func @transform_12(%arg0: i32) -> (i32, i32) {
    %c0_i32 = arith.constant 0 : i32
    %c0_i32_0 = arith.constant 0 : i32
    %c0_i32_1 = arith.constant 0 : i32
    return %c0_i32, %c0_i32_0 : i32, i32
  }
  func.func @transform_13(%arg0: i32) -> (i32, i32) {
    %c0_i32 = arith.constant 0 : i32
    %c0_i32_0 = arith.constant 0 : i32
    %c0_i32_1 = arith.constant 0 : i32
    return %c0_i32, %c0_i32_0 : i32, i32
  }
  func.func @transform_14(%arg0: i32) -> (i32, i32, i32) {
    %c0_i32 = arith.constant 0 : i32
    %c0_i32_0 = arith.constant 0 : i32
    %c0_i32_1 = arith.constant 0 : i32
    return %arg0, %c0_i32, %c0_i32_0 : i32, i32, i32
  }
}

</mosaic_0001>

<llo_original>
// kernel: tpu_custom_call.1
$region0: #{tpu_custom_call.1}
  #allocation0 [shape = 'u32[]', space=smem, size = 0x4, offset = 0x4, fixed_abs, tag = 'smem constant byte address 0x4 - core index']
  #allocation1 [shape = 'u32[72,128]{1,0:T(1,128)}', space=vmem, size = 0x9000, scoped, tag = 'internal scratch']
  %s0 = inlined_call_operand.hbm [shape: bf16[32,32], index: 0, kind: input, shape index: {}]
  %s1 = inlined_call_operand.hbm [shape: bf16[3,32,128], index: 1, kind: input, shape index: {}]
  %s2 = inlined_call_operand.vmem [shape: f32[1,128], index: 2, kind: input, shape index: {}]
  %s3 = inlined_call_operand.vmem [shape: f32[1,128], index: 3, kind: input, shape index: {}]
  %s4 = inlined_call_operand.hbm [shape: bf16[3,128,128], index: 4, kind: input, shape index: {}]
  %s5 = inlined_call_operand.vmem [shape: f32[1,128], index: 5, kind: input, shape index: {}]
  %s6 = inlined_call_operand.vmem [shape: f32[1,128], index: 6, kind: input, shape index: {}]
  %s7 = inlined_call_operand.hbm [shape: bf16[3,128,128], index: 7, kind: input, shape index: {}]
  %s8 = inlined_call_operand.vmem [shape: f32[1,128], index: 8, kind: input, shape index: {}]
  %s9 = inlined_call_operand.vmem [shape: f32[1,128], index: 9, kind: input, shape index: {}]
  %s10 = inlined_call_operand.hbm [shape: bf16[128,128], index: 10, kind: input, shape index: {}]
  %s11 = inlined_call_operand.hbm [shape: bf16[128,128], index: 11, kind: input, shape index: {}]
  %s12 = inlined_call_operand.hbm [shape: bf16[128,128], index: 12, kind: input, shape index: {}]
  %s13 = inlined_call_operand.vmem [shape: f32[1,128], index: 13, kind: input, shape index: {}]
  %s14 = inlined_call_operand.hbm [shape: f32[2,1,128], index: 14, kind: output, shape index: {}]
  %s15 = sld [smem:[#allocation0]]
  $region117: #{tpu_custom_call.1} parent=0
    _
  %s17 = ssub.s32 1, %s15
  %s18 = scalar_select 0, %s17, %s15
  $region1: #{tpu_custom_call.1} parent=0
    #allocation2 [shape = 'u8[8192]{0}', space=vmem, size = 0x2000, scoped, tag = 'input window, operand 0']
    #allocation3 [shape = 's32[2]{0}', space=sflag, size = 0x8, scoped, tag = 'scoped memory for tpu_custom_call.1']
    #allocation4 [shape = 's32[2]{0}', space=sflag, size = 0x8, scoped, tag = 'scoped memory for tpu_custom_call.1']
    #allocation5 [shape = 'u8[24576]{0}', space=vmem, size = 0x6000, scoped, tag = 'input window, operand 1, single buffered']
    #allocation6 [shape = 's32[1]{0}', space=sflag, size = 0x4, scoped, tag = 'scoped memory for tpu_custom_call.1']
    #allocation7 [shape = 'u8[98304]{0}', space=vmem, size = 0x18000, scoped, tag = 'input window, operand 4, single buffered']
    #allocation8 [shape = 'u8[98304]{0}', space=vmem, size = 0x18000, scoped, tag = 'input window, operand 7, single buffered']
    #allocation9 [shape = 's32[1]{0}', space=sflag, size = 0x4, scoped, tag = 'scoped memory for tpu_custom_call.1']
    #allocation10 [shape = 'u8[32768]{0}', space=vmem, size = 0x8000, scoped, tag = 'input window, operand 10, single buffered']
    #allocation11 [shape = 'u8[32768]{0}', space=vmem, size = 0x8000, scoped, tag = 'input window, operand 11, single buffered']
    #allocation12 [shape = 's32[1]{0}', space=sflag, size = 0x4, scoped, tag = 'scoped memory for tpu_custom_call.1']
    #allocation13 [shape = 'u8[32768]{0}', space=vmem, size = 0x8000, scoped, tag = 'input window, operand 12, single buffered']
    #allocation14 [shape = 'u8[1024]{0}', space=vmem, size = 0x400, scoped, tag = 'output window, operand 0']
    %19 = vsyncpa [#allocation3], 0
    %s20 = scalar_lea.sflag [#allocation3], 1
    %21 = vsyncpa %s20, 0
    %22 = vsyncpa [#allocation6], 0
    %23 = vsyncpa [#allocation9], 0
    %24 = vsyncpa [#allocation12], 0
    %25 = vsyncpa [#allocation4], 0
    %s26 = scalar_lea.sflag [#allocation4], 1
    %27 = vsyncpa %s26, 0
    loop: start=0, step=1, limit=4
    $region2: #{tpu_custom_call.1} parent=1 // loop_pre_header
      _
    $region3: #{tpu_custom_call.1} parent=1 // loop_header
      %s29 = sphi 0, %s33
      %p30 = scmp.ge.s32.totalorder %s29, 4
      %s39 = sphi 0, %s41
      %s42 = sphi 0, %s39
      %s43 = sphi 0, %s42
      %s59 = sphi 0, %s43
      %s63 = sphi 0, %s63
      %s65 = sphi 0, %s63
      %s66 = sphi 0, %s65
      %s80 = sphi 0, %s66
      %s84 = sphi 0, %s84
      %s86 = sphi 0, %s84
      %s87 = sphi 0, %s86
      %s101 = sphi 0, %s87
      %s105 = sphi 0, %s105
      %s107 = sphi 0, %s105
      %s108 = sphi 0, %s107
      %s122 = sphi 0, %s108
      %s126 = sphi 0, %s126
      %s128 = sphi 0, %s126
      %s129 = sphi 0, %s128
      %s143 = sphi 0, %s129
      %s147 = sphi 0, %s147
      %s149 = sphi 0, %s147
      %s150 = sphi 0, %s149
      %s164 = sphi 0, %s150
      %s168 = sphi 0, %s168
      %s170 = sphi 0, %s168
      %s171 = sphi 0, %s170
      %s185 = sphi 0, %s171
      %s189 = sphi 0, %s189
      %s191 = sphi 0, %s189
      %s192 = sphi 0, %s191
      %s206 = sphi 0, %s192
      %s210 = sphi 0, %s210
      %s212 = sphi 0, %s210
      %s213 = sphi 0, %s212
      %s227 = sphi 0, %s213
      %s231 = sphi 0, %s231
      %s233 = sphi 0, %s231
      %s234 = sphi 0, %s233
      %s248 = sphi 0, %s234
      %s252 = sphi 0, %s252
      %s254 = sphi 0, %s252
      %s255 = sphi 0, %s254
      %s269 = sphi 0, %s255
      %s273 = sphi 0, %s273
      %s275 = sphi 0, %s273
      %s276 = sphi 0, %s275
      %s290 = sphi 0, %s276
      %s294 = sphi 0, %s294
      %s296 = sphi 0, %s294
      %s297 = sphi 0, %s296
      %s311 = sphi 0, %s297
      %s315 = sphi 0, %s315
      %s317 = sphi 0, %s315
      %s318 = sphi 0, %s317
      %s332 = sphi 0, %s318
      %s338 = sphi 0, %s340
      %s341 = sphi 0, %s338
      %s342 = sphi 0, %s341
      %s358 = sphi 0, %s342
    $region4: #{tpu_custom_call.1} parent=1 // loop_header_branch
      %32 = sbr.rel (%p30) target = $region8
    $region5: #{tpu_custom_call.1} parent=1 // loop_body
      %s34 = ssub.s32 %s29, 1
      %s35 = ssub.s32 %s29, 2
      %s36 = sadd.s32 %s29, 1
      %s37 = ssub.s32 %s29, %s36
      %p38 = scmp.eq.s32.totalorder %s37, 0
      %s40 = sadd.s32 %s39, 1
      %s41 = scalar_select %p38, %s39, %s40
      %p44 = pneg %p38
      %p45 = scmp.eq.s32.totalorder %s29, 1
      %p46 = por %p44, %p45
      %p47 = scmp.ne.s32.totalorder %s39, %s42
      %p48 = scmp.eq.s32.totalorder %s29, 0
      %p49 = por %p47, %p48
      %p50 = scmp.ne.s32.totalorder %s39, %s42
      %p51 = scmp.eq.s32.totalorder %s34, 1
      %p52 = por %p50, %p51
      %p53 = scmp.ne.s32.totalorder %s42, %s43
      %p54 = scmp.eq.s32.totalorder %s34, 0
      %p55 = por %p53, %p54
      %p56 = scmp.ne.s32.totalorder %s42, %s43
      %p57 = scmp.eq.s32.totalorder %s35, 1
      %p58 = por %p56, %p57
      %p60 = scmp.ne.s32.totalorder %s43, %s59
      %p61 = scmp.eq.s32.totalorder %s35, 0
      %p62 = por %p60, %p61
      %s64 = sadd.s32 %s63, 1
      %p67 = scmp.eq.s32.totalorder %s29, 1
      %p68 = scmp.ne.s32.totalorder %s63, %s65
      %p69 = scmp.eq.s32.totalorder %s29, 0
      %p70 = por %p68, %p69
      %p71 = scmp.ne.s32.totalorder %s63, %s65
      %p72 = scmp.eq.s32.totalorder %s34, 1
      %p73 = por %p71, %p72
      %p74 = scmp.ne.s32.totalorder %s65, %s66
      %p75 = scmp.eq.s32.totalorder %s34, 0
      %p76 = por %p74, %p75
      %p77 = scmp.ne.s32.totalorder %s65, %s66
      %p78 = scmp.eq.s32.totalorder %s35, 1
      %p79 = por %p77, %p78
      %p81 = scmp.ne.s32.totalorder %s66, %s80
      %p82 = scmp.eq.s32.totalorder %s35, 0
      %p83 = por %p81, %p82
      %s85 = sadd.s32 %s84, 1
      %p88 = scmp.eq.s32.totalorder %s29, 1
      %p89 = scmp.ne.s32.totalorder %s84, %s86
      %p90 = scmp.eq.s32.totalorder %s29, 0
      %p91 = por %p89, %p90
      %p92 = scmp.ne.s32.totalorder %s84, %s86
      %p93 = scmp.eq.s32.totalorder %s34, 1
      %p94 = por %p92, %p93
      %p95 = scmp.ne.s32.totalorder %s86, %s87
      %p96 = scmp.eq.s32.totalorder %s34, 0
      %p97 = por %p95, %p96
      %p98 = scmp.ne.s32.totalorder %s86, %s87
      %p99 = scmp.eq.s32.totalorder %s35, 1
      %p100 = por %p98, %p99
      %p102 = scmp.ne.s32.totalorder %s87, %s101
      %p103 = scmp.eq.s32.totalorder %s35, 0
      %p104 = por %p102, %p103
      %s106 = sadd.s32 %s105, 1
      %p109 = scmp.eq.s32.totalorder %s29, 1
      %p110 = scmp.ne.s32.totalorder %s105, %s107
      %p111 = scmp.eq.s32.totalorder %s29, 0
      %p112 = por %p110, %p111
      %p113 = scmp.ne.s32.totalorder %s105, %s107
      %p114 = scmp.eq.s32.totalorder %s34, 1
      %p115 = por %p113, %p114
      %p116 = scmp.ne.s32.totalorder %s107, %s108
      %p117 = scmp.eq.s32.totalorder %s34, 0
      %p118 = por %p116, %p117
      %p119 = scmp.ne.s32.totalorder %s107, %s108
      %p120 = scmp.eq.s32.totalorder %s35, 1
      %p121 = por %p119, %p120
      %p123 = scmp.ne.s32.totalorder %s108, %s122
      %p124 = scmp.eq.s32.totalorder %s35, 0
      %p125 = por %p123, %p124
      %s127 = sadd.s32 %s126, 1
      %p130 = scmp.eq.s32.totalorder %s29, 1
      %p131 = scmp.ne.s32.totalorder %s126, %s128
      %p132 = scmp.eq.s32.totalorder %s29, 0
      %p133 = por %p131, %p132
      %p134 = scmp.ne.s32.totalorder %s126, %s128
      %p135 = scmp.eq.s32.totalorder %s34, 1
      %p136 = por %p134, %p135
      %p137 = scmp.ne.s32.totalorder %s128, %s129
      %p138 = scmp.eq.s32.totalorder %s34, 0
      %p139 = por %p137, %p138
      %p140 = scmp.ne.s32.totalorder %s128, %s129
      %p141 = scmp.eq.s32.totalorder %s35, 1
      %p142 = por %p140, %p141
      %p144 = scmp.ne.s32.totalorder %s129, %s143
      %p145 = scmp.eq.s32.totalorder %s35, 0
      %p146 = por %p144, %p145
      %s148 = sadd.s32 %s147, 1
      %p151 = scmp.eq.s32.totalorder %s29, 1
      %p152 = scmp.ne.s32.totalorder %s147, %s149
      %p153 = scmp.eq.s32.totalorder %s29, 0
      %p154 = por %p152, %p153
      %p155 = scmp.ne.s32.totalorder %s147, %s149
      %p156 = scmp.eq.s32.totalorder %s34, 1
      %p157 = por %p155, %p156
      %p158 = scmp.ne.s32.totalorder %s149, %s150
      %p159 = scmp.eq.s32.totalorder %s34, 0
      %p160 = por %p158, %p159
      %p161 = scmp.ne.s32.totalorder %s149, %s150
      %p162 = scmp.eq.s32.totalorder %s35, 1
      %p163 = por %p161, %p162
      %p165 = scmp.ne.s32.totalorder %s150, %s164
      %p166 = scmp.eq.s32.totalorder %s35, 0
      %p167 = por %p165, %p166
      %s169 = sadd.s32 %s168, 1
      %p172 = scmp.eq.s32.totalorder %s29, 1
      %p173 = scmp.ne.s32.totalorder %s168, %s170
      %p174 = scmp.eq.s32.totalorder %s29, 0
      %p175 = por %p173, %p174
      %p176 = scmp.ne.s32.totalorder %s168, %s170
      %p177 = scmp.eq.s32.totalorder %s34, 1
      %p178 = por %p176, %p177
      %p179 = scmp.ne.s32.totalorder %s170, %s171
      %p180 = scmp.eq.s32.totalorder %s34, 0
      %p181 = por %p179, %p180
      %p182 = scmp.ne.s32.totalorder %s170, %s171
      %p183 = scmp.eq.s32.totalorder %s35, 1
      %p184 = por %p182, %p183
      %p186 = scmp.ne.s32.totalorder %s171, %s185
      %p187 = scmp.eq.s32.totalorder %s35, 0
      %p188 = por %p186, %p187
      %s190 = sadd.s32 %s189, 1
      %p193 = scmp.eq.s32.totalorder %s29, 1
      %p194 = scmp.ne.s32.totalorder %s189, %s191
      %p195 = scmp.eq.s32.totalorder %s29, 0
      %p196 = por %p194, %p195
      %p197 = scmp.ne.s32.totalorder %s189, %s191
      %p198 = scmp.eq.s32.totalorder %s34, 1
      %p199 = por %p197, %p198
      %p200 = scmp.ne.s32.totalorder %s191, %s192
      %p201 = scmp.eq.s32.totalorder %s34, 0
      %p202 = por %p200, %p201
      %p203 = scmp.ne.s32.totalorder %s191, %s192
      %p204 = scmp.eq.s32.totalorder %s35, 1
      %p205 = por %p203, %p204
      %p207 = scmp.ne.s32.totalorder %s192, %s206
      %p208 = scmp.eq.s32.totalorder %s35, 0
      %p209 = por %p207, %p208
      %s211 = sadd.s32 %s210, 1
      %p214 = scmp.eq.s32.totalorder %s29, 1
      %p215 = scmp.ne.s32.totalorder %s210, %s212
      %p216 = scmp.eq.s32.totalorder %s29, 0
      %p217 = por %p215, %p216
      %p218 = scmp.ne.s32.totalorder %s210, %s212
      %p219 = scmp.eq.s32.totalorder %s34, 1
      %p220 = por %p218, %p219
      %p221 = scmp.ne.s32.totalorder %s212, %s213
      %p222 = scmp.eq.s32.totalorder %s34, 0
      %p223 = por %p221, %p222
      %p224 = scmp.ne.s32.totalorder %s212, %s213
      %p225 = scmp.eq.s32.totalorder %s35, 1
      %p226 = por %p224, %p225
      %p228 = scmp.ne.s32.totalorder %s213, %s227
      %p229 = scmp.eq.s32.totalorder %s35, 0
      %p230 = por %p228, %p229
      %s232 = sadd.s32 %s231, 1
      %p235 = scmp.eq.s32.totalorder %s29, 1
      %p236 = scmp.ne.s32.totalorder %s231, %s233
      %p237 = scmp.eq.s32.totalorder %s29, 0
      %p238 = por %p236, %p237
      %p239 = scmp.ne.s32.totalorder %s231, %s233
      %p240 = scmp.eq.s32.totalorder %s34, 1
      %p241 = por %p239, %p240
      %p242 = scmp.ne.s32.totalorder %s233, %s234
      %p243 = scmp.eq.s32.totalorder %s34, 0
      %p244 = por %p242, %p243
      %p245 = scmp.ne.s32.totalorder %s233, %s234
      %p246 = scmp.eq.s32.totalorder %s35, 1
      %p247 = por %p245, %p246
      %p249 = scmp.ne.s32.totalorder %s234, %s248
      %p250 = scmp.eq.s32.totalorder %s35, 0
      %p251 = por %p249, %p250
      %s253 = sadd.s32 %s252, 1
      %p256 = scmp.eq.s32.totalorder %s29, 1
      %p257 = scmp.ne.s32.totalorder %s252, %s254
      %p258 = scmp.eq.s32.totalorder %s29, 0
      %p259 = por %p257, %p258
      %p260 = scmp.ne.s32.totalorder %s252, %s254
      %p261 = scmp.eq.s32.totalorder %s34, 1
      %p262 = por %p260, %p261
      %p263 = scmp.ne.s32.totalorder %s254, %s255
      %p264 = scmp.eq.s32.totalorder %s34, 0
      %p265 = por %p263, %p264
      %p266 = scmp.ne.s32.totalorder %s254, %s255
      %p267 = scmp.eq.s32.totalorder %s35, 1
      %p268 = por %p266, %p267
      %p270 = scmp.ne.s32.totalorder %s255, %s269
      %p271 = scmp.eq.s32.totalorder %s35, 0
      %p272 = por %p270, %p271
      %s274 = sadd.s32 %s273, 1
      %p277 = scmp.eq.s32.totalorder %s29, 1
      %p278 = scmp.ne.s32.totalorder %s273, %s275
      %p279 = scmp.eq.s32.totalorder %s29, 0
      %p280 = por %p278, %p279
      %p281 = scmp.ne.s32.totalorder %s273, %s275
      %p282 = scmp.eq.s32.totalorder %s34, 1
      %p283 = por %p281, %p282
      %p284 = scmp.ne.s32.totalorder %s275, %s276
      %p285 = scmp.eq.s32.totalorder %s34, 0
      %p286 = por %p284, %p285
      %p287 = scmp.ne.s32.totalorder %s275, %s276
      %p288 = scmp.eq.s32.totalorder %s35, 1
      %p289 = por %p287, %p288
      %p291 = scmp.ne.s32.totalorder %s276, %s290
      %p292 = scmp.eq.s32.totalorder %s35, 0
      %p293 = por %p291, %p292
      %s295 = sadd.s32 %s294, 1
      %p298 = scmp.eq.s32.totalorder %s29, 1
      %p299 = scmp.ne.s32.totalorder %s294, %s296
      %p300 = scmp.eq.s32.totalorder %s29, 0
      %p301 = por %p299, %p300
      %p302 = scmp.ne.s32.totalorder %s294, %s296
      %p303 = scmp.eq.s32.totalorder %s34, 1
      %p304 = por %p302, %p303
      %p305 = scmp.ne.s32.totalorder %s296, %s297
      %p306 = scmp.eq.s32.totalorder %s34, 0
      %p307 = por %p305, %p306
      %p308 = scmp.ne.s32.totalorder %s296, %s297
      %p309 = scmp.eq.s32.totalorder %s35, 1
      %p310 = por %p308, %p309
      %p312 = scmp.ne.s32.totalorder %s297, %s311
      %p313 = scmp.eq.s32.totalorder %s35, 0
      %p314 = por %p312, %p313
      %s316 = sadd.s32 %s315, 1
      %p319 = scmp.eq.s32.totalorder %s29, 1
      %p320 = scmp.ne.s32.totalorder %s315, %s317
      %p321 = scmp.eq.s32.totalorder %s29, 0
      %p322 = por %p320, %p321
      %p323 = scmp.ne.s32.totalorder %s315, %s317
      %p324 = scmp.eq.s32.totalorder %s34, 1
      %p325 = por %p323, %p324
      %p326 = scmp.ne.s32.totalorder %s317, %s318
      %p327 = scmp.eq.s32.totalorder %s34, 0
      %p328 = por %p326, %p327
      %p329 = scmp.ne.s32.totalorder %s317, %s318
      %p330 = scmp.eq.s32.totalorder %s35, 1
      %p331 = por %p329, %p330
      %p333 = scmp.ne.s32.totalorder %s318, %s332
      %p334 = scmp.eq.s32.totalorder %s35, 0
      %p335 = por %p333, %p334
      %s336 = ssub.s32 %s29, %s36
      %p337 = scmp.eq.s32.totalorder %s336, 0
      %s339 = sadd.s32 %s338, 1
      %s340 = scalar_select %p337, %s338, %s339
      %p343 = pneg %p337
      %p344 = scmp.eq.s32.totalorder %s29, 1
      %p345 = por %p343, %p344
      %p346 = scmp.ne.s32.totalorder %s338, %s341
      %p347 = scmp.eq.s32.totalorder %s29, 0
      %p348 = por %p346, %p347
      %p349 = scmp.ne.s32.totalorder %s338, %s341
      %p350 = scmp.eq.s32.totalorder %s34, 1
      %p351 = por %p349, %p350
      %p352 = scmp.ne.s32.totalorder %s341, %s342
      %p353 = scmp.eq.s32.totalorder %s34, 0
      %p354 = por %p352, %p353
      %p355 = scmp.ne.s32.totalorder %s341, %s342
      %p356 = scmp.eq.s32.totalorder %s35, 1
      %p357 = por %p355, %p356
      %p359 = scmp.ne.s32.totalorder %s342, %s358
      %p360 = scmp.eq.s32.totalorder %s35, 0
      %p361 = por %p359, %p360
      %p362 = scmp.le.s32.totalorder 1, %s29
      %p363 = scmp.lt.s32.totalorder %s29, 3
      %p364 = pnand %p362, %p363
      %p365 = pneg %p364
      // Predicated region
      $region9: #{tpu_custom_call.1} parent=5 // pred_check
        _
      $region10: #{tpu_custom_call.1} parent=5 // pred_check_branch
        %367 = sbr.rel (%p364) target = $region12
      $region11: #{tpu_custom_call.1} parent=5 // pred_region
        %s368 = ssub.s32 %s29, 1
        // Predicated region
        $region13: #{tpu_custom_call.1} parent=11 // pred_check
          %p369 = pneg %p76
        $region14: #{tpu_custom_call.1} parent=11 // pred_check_branch
          %371 = sbr.rel (%p369) target = $region16
        $region15: #{tpu_custom_call.1} parent=11 // pred_region
          %373 = vsyncadd [#allocation6], 0
          %s374 = sshll.u32 %s1, 4
          %s375 = int_to_ptr.hbm [resolvable:$true] %s374
          %s376 = sshll.u32 [#allocation5], 4
          %s377 = int_to_ptr.vmem [resolvable:$true] %s376
          %382 = dma.hbm_to_vmem [thread:$0]  %s375, 768, %s377, [#allocation6], 64, 64, 4
        $region16: #{tpu_custom_call.1} parent=11 // pred_fallthru
          _
        // Predicated region
        $region17: #{tpu_custom_call.1} parent=11 // pred_check
          %p383 = pneg %p97
        $region18: #{tpu_custom_call.1} parent=11 // pred_check_branch
          %385 = sbr.rel (%p383) target = $region20
        $region19: #{tpu_custom_call.1} parent=11 // pred_region
          _
        $region20: #{tpu_custom_call.1} parent=11 // pred_fallthru
          _
        // Predicated region
        $region21: #{tpu_custom_call.1} parent=11 // pred_check
          %p386 = pneg %p118
        $region22: #{tpu_custom_call.1} parent=11 // pred_check_branch
          %388 = sbr.rel (%p386) target = $region24
        $region23: #{tpu_custom_call.1} parent=11 // pred_region
          _
        $region24: #{tpu_custom_call.1} parent=11 // pred_fallthru
          _
        // Predicated region
        $region25: #{tpu_custom_call.1} parent=11 // pred_check
          %p389 = pneg %p139
        $region26: #{tpu_custom_call.1} parent=11 // pred_check_branch
          %391 = sbr.rel (%p389) target = $region28
        $region27: #{tpu_custom_call.1} parent=11 // pred_region
          %393 = vsyncadd [#allocation6], 0
          %s394 = sshll.u32 %s4, 4
          %s395 = int_to_ptr.hbm [resolvable:$true] %s394
          %s396 = sshll.u32 [#allocation7], 4
          %s397 = int_to_ptr.vmem [resolvable:$true] %s396
          %402 = dma.hbm_to_vmem [thread:$0]  %s395, 3072, %s397, [#allocation6], 64, 64, 4
        $region28: #{tpu_custom_call.1} parent=11 // pred_fallthru
          _
        // Predicated region
        $region29: #{tpu_custom_call.1} parent=11 // pred_check
          %p403 = pneg %p160
        $region30: #{tpu_custom_call.1} parent=11 // pred_check_branch
          %405 = sbr.rel (%p403) target = $region32
        $region31: #{tpu_custom_call.1} parent=11 // pred_region
          _
        $region32: #{tpu_custom_call.1} parent=11 // pred_fallthru
          _
        // Predicated region
        $region33: #{tpu_custom_call.1} parent=11 // pred_check
          %p406 = pneg %p181
        $region34: #{tpu_custom_call.1} parent=11 // pred_check_branch
          %408 = sbr.rel (%p406) target = $region36
        $region35: #{tpu_custom_call.1} parent=11 // pred_region
          _
        $region36: #{tpu_custom_call.1} parent=11 // pred_fallthru
          _
        // Predicated region
        $region37: #{tpu_custom_call.1} parent=11 // pred_check
          %p409 = pneg %p202
        $region38: #{tpu_custom_call.1} parent=11 // pred_check_branch
          %411 = sbr.rel (%p409) target = $region40
        $region39: #{tpu_custom_call.1} parent=11 // pred_region
          %413 = vsyncadd [#allocation9], 0
          %s414 = sshll.u32 %s7, 4
          %s415 = int_to_ptr.hbm [resolvable:$true] %s414
          %s416 = sshll.u32 [#allocation8], 4
          %s417 = int_to_ptr.vmem [resolvable:$true] %s416
          %422 = dma.hbm_to_vmem [thread:$0]  %s415, 3072, %s417, [#allocation9], 64, 64, 4
        $region40: #{tpu_custom_call.1} parent=11 // pred_fallthru
          _
        // Predicated region
        $region41: #{tpu_custom_call.1} parent=11 // pred_check
          %p423 = pneg %p223
        $region42: #{tpu_custom_call.1} parent=11 // pred_check_branch
          %425 = sbr.rel (%p423) target = $region44
        $region43: #{tpu_custom_call.1} parent=11 // pred_region
          _
        $region44: #{tpu_custom_call.1} parent=11 // pred_fallthru
          _
        // Predicated region
        $region45: #{tpu_custom_call.1} parent=11 // pred_check
          %p426 = pneg %p244
        $region46: #{tpu_custom_call.1} parent=11 // pred_check_branch
          %428 = sbr.rel (%p426) target = $region48
        $region47: #{tpu_custom_call.1} parent=11 // pred_region
          _
        $region48: #{tpu_custom_call.1} parent=11 // pred_fallthru
          _
        // Predicated region
        $region49: #{tpu_custom_call.1} parent=11 // pred_check
          %p429 = pneg %p265
        $region50: #{tpu_custom_call.1} parent=11 // pred_check_branch
          %431 = sbr.rel (%p429) target = $region52
        $region51: #{tpu_custom_call.1} parent=11 // pred_region
          %433 = vsyncadd [#allocation9], 0
          %s434 = sshll.u32 %s10, 4
          %s435 = int_to_ptr.hbm [resolvable:$true] %s434
          %s436 = sshll.u32 [#allocation10], 4
          %s437 = int_to_ptr.vmem [resolvable:$true] %s436
          %442 = dma.hbm_to_vmem [thread:$0]  %s435, 1024, %s437, [#allocation9], 64, 64, 4
        $region52: #{tpu_custom_call.1} parent=11 // pred_fallthru
          _
        // Predicated region
        $region53: #{tpu_custom_call.1} parent=11 // pred_check
          %p443 = pneg %p286
        $region54: #{tpu_custom_call.1} parent=11 // pred_check_branch
          %445 = sbr.rel (%p443) target = $region56
        $region55: #{tpu_custom_call.1} parent=11 // pred_region
          %447 = vsyncadd [#allocation12], 0
          %s448 = sshll.u32 %s11, 4
          %s449 = int_to_ptr.hbm [resolvable:$true] %s448
          %s450 = sshll.u32 [#allocation11], 4
          %s451 = int_to_ptr.vmem [resolvable:$true] %s450
          %456 = dma.hbm_to_vmem [thread:$0]  %s449, 1024, %s451, [#allocation12], 64, 64, 4
        $region56: #{tpu_custom_call.1} parent=11 // pred_fallthru
          _
        // Predicated region
        $region57: #{tpu_custom_call.1} parent=11 // pred_check
          %p457 = pneg %p307
        $region58: #{tpu_custom_call.1} parent=11 // pred_check_branch
          %459 = sbr.rel (%p457) target = $region60
        $region59: #{tpu_custom_call.1} parent=11 // pred_region
          %461 = vsyncadd [#allocation12], 0
          %s462 = sshll.u32 %s12, 4
          %s463 = int_to_ptr.hbm [resolvable:$true] %s462
          %s464 = sshll.u32 [#allocation13], 4
          %s465 = int_to_ptr.vmem [resolvable:$true] %s464
          %470 = dma.hbm_to_vmem [thread:$0]  %s463, 1024, %s465, [#allocation12], 64, 64, 4
        $region60: #{tpu_custom_call.1} parent=11 // pred_fallthru
          _
        // Predicated region
        $region61: #{tpu_custom_call.1} parent=11 // pred_check
          %p471 = pneg %p328
        $region62: #{tpu_custom_call.1} parent=11 // pred_check_branch
          %473 = sbr.rel (%p471) target = $region64
        $region63: #{tpu_custom_call.1} parent=11 // pred_region
          _
        $region64: #{tpu_custom_call.1} parent=11 // pred_fallthru
          _
      $region12: #{tpu_custom_call.1} parent=5 // pred_fallthru
        _
      %p474 = scmp.lt.s32.totalorder %s29, 2
      // Predicated region
      $region65: #{tpu_custom_call.1} parent=5 // pred_check
        %p475 = pneg %p474
      $region66: #{tpu_custom_call.1} parent=5 // pred_check_branch
        %477 = sbr.rel (%p475) target = $region68
      $region67: #{tpu_custom_call.1} parent=5 // pred_region
        // Predicated region
        $region69: #{tpu_custom_call.1} parent=67 // pred_check
          %p478 = pneg %p49
        $region70: #{tpu_custom_call.1} parent=67 // pred_check_branch
          %480 = sbr.rel (%p478) target = $region72
        $region71: #{tpu_custom_call.1} parent=67 // pred_region
          %s481 = sand.u32 %s39, 1
          %s482 = scalar_lea.sflag [#allocation3], %s481
          %s483 = sand.u32 %s39, 1
          %s484 = smul.addr %s483, 8
          %s485 = scalar_lea.vmem [#allocation2], %s484
          %s486 = smul.u32 2, %s29
          %488 = vsyncadd %s482, 0
          %s489 = smul.addr %s486, 4
          %s490 = scalar_lea.hbm %s0, %s489
          %s491 = sshll.u32 %s490, 4
          %s492 = int_to_ptr.hbm [resolvable:$true] %s491
          %s493 = sshll.u32 %s485, 4
          %s494 = int_to_ptr.vmem [resolvable:$true] %s493
          %499 = dma.hbm_to_vmem [thread:$0]  %s492, 128, %s494, %s482, 64, 64, 4
        $region72: #{tpu_custom_call.1} parent=67 // pred_fallthru
          _
      $region68: #{tpu_custom_call.1} parent=5 // pred_fallthru
        _
      %p500 = scmp.le.s32.totalorder 1, %s29
      %p501 = scmp.lt.s32.totalorder %s29, 3
      %p502 = pnand %p500, %p501
      %p503 = pneg %p502
      // Predicated region
      $region73: #{tpu_custom_call.1} parent=5 // pred_check
        _
      $region74: #{tpu_custom_call.1} parent=5 // pred_check_branch
        %505 = sbr.rel (%p502) target = $region76
      $region75: #{tpu_custom_call.1} parent=5 // pred_region
        %s506 = ssub.s32 %s29, 1
        %s507 = sand.u32 %s42, 1
        %s508 = scalar_lea.sflag [#allocation3], %s507
        %s509 = sand.u32 %s42, 1
        %s510 = smul.addr %s509, 8
        %s511 = scalar_lea.vmem [#allocation2], %s510
        // Predicated region
        $region77: #{tpu_custom_call.1} parent=75 // pred_check
          %p512 = pneg %p55
        $region78: #{tpu_custom_call.1} parent=75 // pred_check_branch
          %514 = sbr.rel (%p512) target = $region80
        $region79: #{tpu_custom_call.1} parent=75 // pred_region
          %516 = dma.done %s508, 128
        $region80: #{tpu_custom_call.1} parent=75 // pred_fallthru
          _
        // Predicated region
        $region81: #{tpu_custom_call.1} parent=75 // pred_check
          %p517 = pneg %p76
        $region82: #{tpu_custom_call.1} parent=75 // pred_check_branch
          %519 = sbr.rel (%p517) target = $region84
        $region83: #{tpu_custom_call.1} parent=75 // pred_region
          %521 = dma.done [#allocation6], 768
        $region84: #{tpu_custom_call.1} parent=75 // pred_fallthru
          _
        // Predicated region
        $region85: #{tpu_custom_call.1} parent=75 // pred_check
          %p522 = pneg %p139
        $region86: #{tpu_custom_call.1} parent=75 // pred_check_branch
          %524 = sbr.rel (%p522) target = $region88
        $region87: #{tpu_custom_call.1} parent=75 // pred_region
          %526 = dma.done [#allocation6], 3072
        $region88: #{tpu_custom_call.1} parent=75 // pred_fallthru
          _
        // Predicated region
        $region89: #{tpu_custom_call.1} parent=75 // pred_check
          %p527 = pneg %p202
        $region90: #{tpu_custom_call.1} parent=75 // pred_check_branch
          %529 = sbr.rel (%p527) target = $region92
        $region91: #{tpu_custom_call.1} parent=75 // pred_region
          %531 = dma.done [#allocation9], 3072
        $region92: #{tpu_custom_call.1} parent=75 // pred_fallthru
          _
        // Predicated region
        $region93: #{tpu_custom_call.1} parent=75 // pred_check
          %p532 = pneg %p265
        $region94: #{tpu_custom_call.1} parent=75 // pred_check_branch
          %534 = sbr.rel (%p532) target = $region96
        $region95: #{tpu_custom_call.1} parent=75 // pred_region
          %536 = dma.done [#allocation9], 1024
        $region96: #{tpu_custom_call.1} parent=75 // pred_fallthru
          _
        // Predicated region
        $region97: #{tpu_custom_call.1} parent=75 // pred_check
          %p537 = pneg %p286
        $region98: #{tpu_custom_call.1} parent=75 // pred_check_branch
          %539 = sbr.rel (%p537) target = $region100
        $region99: #{tpu_custom_call.1} parent=75 // pred_region
          %541 = dma.done [#allocation12], 1024
        $region100: #{tpu_custom_call.1} parent=75 // pred_fallthru
          _
        // Predicated region
        $region101: #{tpu_custom_call.1} parent=75 // pred_check
          %p542 = pneg %p307
        $region102: #{tpu_custom_call.1} parent=75 // pred_check_branch
          %544 = sbr.rel (%p542) target = $region104
        $region103: #{tpu_custom_call.1} parent=75 // pred_region
          %546 = dma.done [#allocation12], 1024
        $region104: #{tpu_custom_call.1} parent=75 // pred_fallthru
          _
        %s547 = sand.u32 %s42, 1
        %s548 = scalar_lea.sflag [#allocation3], %s547
        %s549 = sand.u32 %s42, 1
        %s550 = smul.addr %s549, 8
        %s551 = scalar_lea.vmem [#allocation2], %s550
        %p552 = pneg %p55
        %p553 = pneg %p52
        %p554 = pneg %p76
        %p555 = pneg %p73
        %p556 = pneg %p97
        %p557 = pneg %p94
        %p558 = pneg %p118
        %p559 = pneg %p115
        %p560 = pneg %p139
        %p561 = pneg %p136
        %p562 = pneg %p160
        %p563 = pneg %p157
        %p564 = pneg %p181
        %p565 = pneg %p178
        %p566 = pneg %p202
        %p567 = pneg %p199
        %p568 = pneg %p223
        %p569 = pneg %p220
        %p570 = pneg %p244
        %p571 = pneg %p241
        %p572 = pneg %p265
        %p573 = pneg %p262
        %p574 = pneg %p286
        %p575 = pneg %p283
        %p576 = pneg %p307
        %p577 = pneg %p304
        %p578 = pneg %p328
        %p579 = pneg %p325
        %p580 = pneg %p354
        %p581 = pneg %p351
        %s582 = sand.u32 %s341, 1
        %s583 = scalar_lea.sflag [#allocation4], %s582
        %s584 = sand.u32 %s341, 1
        %s585 = scalar_lea.vmem [#allocation14], %s584
        %s586 = smul.u32 2, %s34
        %v588 = vld [vmem:[%s511] sm:$0xf]
        %v589 = vld [vmem:[%s511 + $0x4] sm:$0xf]
        %v590 = vlaneseq
        %v591 = vshrl.u32 %v590, 7
        %v592 = vadd.s32 %v591, 8
        %vm593 = vcmp.lt.s32.totalorder %v591, 0
        %v594 = vsub.s32 0, %v591
        %v595 = vsel %vm593, %v594, %v591
        %v596 = vshrl.u32 %v595, 4
        %v597 = vand.u32 %v595, 15
        %v598 = vsub.s32 0, %v597
        %v599 = vsel %vm593, %v598, %v597
        %vm600 = vcmp.lt.s32.totalorder %v592, 0
        %v601 = vsub.s32 0, %v592
        %v602 = vsel %vm600, %v601, %v592
        %v603 = vshrl.u32 %v602, 4
        %v604 = vand.u32 %v602, 15
        %v605 = vsub.s32 0, %v604
        %v606 = vsel %vm600, %v605, %v604
        %vm607 = vcmp.ne.s32.totalorder %v599, 0
        %vm608 = vcmp.ne.s32.totalorder %v606, 0
        %vm609 = vcmp.lt.s32.totalorder %v599, 0
        %vm610 = vcmp.lt.s32.totalorder %v606, 0
        %vm611 = vmand %vm609, %vm607
        %vm612 = vmand %vm610, %vm608
        %v613 = vadd.s32 %v599, 16
        %v614 = vadd.s32 %v606, 16
        %v615 = vsel %vm611, %v613, %v599
        %v616 = vsel %vm612, %v614, %v606
        %v617 = vld [vmem:[#allocation5] sm:$0xf]
        %v618 = vld [vmem:[#allocation5 + $0x4] sm:$0xf]
        %v619 = vld [vmem:[#allocation5 + $0x8] sm:$0xf]
        %v620 = vld [vmem:[#allocation5 + $0xc] sm:$0xf]
        %v623 = vunpack.c.l.b16 %v588
        %v624 = vunpack.c.l.b16 %v589
        %v625 = vpack.c.b16 %v624, %v623
        %v627 = vshrl.u32 %v625, 16
        %v629 = vshll.u32 %v625, 16
        %v631 = vrot.slane %v629, 1
        %v632 = vor.u32 %v627, %v631
        %vm634 = vcmask 1047552
        %vm635 = vsmask.f32 7424
        %vm636 = vmand %vm634, %vm635
        %v637 = vsel %vm636, %v632, 0
        %s638 = scalar_lea.vmem [#allocation5], 16
        %v639 = vld [vmem:[%s638] sm:$0xf]
        %v640 = vld [vmem:[%s638 + $0x4] sm:$0xf]
        %v641 = vld [vmem:[%s638 + $0x8] sm:$0xf]
        %v642 = vld [vmem:[%s638 + $0xc] sm:$0xf]
        %v647 = vunpack.c.l.b16 %v639
        %v648 = vunpack.c.l.b16 %v640
        %v649 = vunpack.c.l.b16 %v641
        %v650 = vunpack.c.l.b16 %v642
        %v651 = vpack.c.b16 %v648, %v647
        %v652 = vpack.c.b16 %v650, %v649
        %vm655 = vcmask 261120
        %v657 = vsel %vm655, %v637, 0
        %659 = vmatpush.bf16.msra.mxu0 0
        %660 = vmatpush.bf16.msra.mxu0 0
        %661 = vmatpush.bf16.msra.mxu0 0
        %662 = vmatpush.bf16.msra.mxu0 0
        %663 = vmatpush.bf16.msra.mxu0 0
        %664 = vmatpush.bf16.msra.mxu0 0
        %665 = vmatpush.bf16.msra.mxu0 %v652
        %666 = vmatpush.bf16.msra.mxu0 %v651
        %667 = vmatmul.bf16.gmra.mxu0 %v657
        %v668 = vpop.f32.mrf.mxu0
        %v669 = vadd.f32 0.0, %v668
        %v670 = vpop.f32.mrf.mxu0
        %v671 = vadd.f32 0.0, %v670
        %672 = vdwg.mxu0
        %v677 = vunpack.c.l.b16 %v617
        %v678 = vunpack.c.l.b16 %v618
        %v679 = vunpack.c.l.b16 %v619
        %v680 = vunpack.c.l.b16 %v620
        %v681 = vpack.c.b16 %v678, %v677
        %v682 = vpack.c.b16 %v680, %v679
        %v685 = vsel %vm655, %v625, 0
        %687 = vmatpush.bf16.msra.mxu0 0
        %688 = vmatpush.bf16.msra.mxu0 0
        %689 = vmatpush.bf16.msra.mxu0 0
        %690 = vmatpush.bf16.msra.mxu0 0
        %691 = vmatpush.bf16.msra.mxu0 0
        %692 = vmatpush.bf16.msra.mxu0 0
        %693 = vmatpush.bf16.msra.mxu0 %v682
        %694 = vmatpush.bf16.msra.mxu0 %v681
        %695 = vmatmul.bf16.gmra.mxu0 %v685
        %v696 = vpop.f32.mrf.mxu0
        %v697 = vadd.f32 %v669, %v696
        %v698 = vpop.f32.mrf.mxu0
        %v699 = vadd.f32 %v671, %v698
        %700 = vdwg.mxu0
        %v701 = vrot.slane %v625, 1
        %vm702 = vcmask 1046528
        %v705 = vsel %vm702, %v701, 0
        %s706 = scalar_lea.vmem [#allocation5], 32
        %v707 = vld [vmem:[%s706] sm:$0xf]
        %v708 = vld [vmem:[%s706 + $0x4] sm:$0xf]
        %v709 = vld [vmem:[%s706 + $0x8] sm:$0xf]
        %v710 = vld [vmem:[%s706 + $0xc] sm:$0xf]
        %v715 = vunpack.c.l.b16 %v707
        %v716 = vunpack.c.l.b16 %v708
        %v717 = vunpack.c.l.b16 %v709
        %v718 = vunpack.c.l.b16 %v710
        %v719 = vpack.c.b16 %v716, %v715
        %v720 = vpack.c.b16 %v718, %v717
        %v723 = vsel %vm655, %v705, 0
        %725 = vmatpush.bf16.msra.mxu0 0
        %726 = vmatpush.bf16.msra.mxu0 0
        %727 = vmatpush.bf16.msra.mxu0 0
        %728 = vmatpush.bf16.msra.mxu0 0
        %729 = vmatpush.bf16.msra.mxu0 0
        %730 = vmatpush.bf16.msra.mxu0 0
        %731 = vmatpush.bf16.msra.mxu0 %v720
        %732 = vmatpush.bf16.msra.mxu0 %v719
        %733 = vmatmul.bf16.gmra.mxu0 %v723
        %v734 = vpop.f32.mrf.mxu0
        %v735 = vadd.f32 0.0, %v734
        %v736 = vpop.f32.mrf.mxu0
        %v737 = vadd.f32 0.0, %v736
        %738 = vdwg.mxu0
        %v739 = vadd.f32 %v697, %v735
        %v740 = vadd.f32 %v699, %v737
        %v741 = vld [vmem:[%s2] sm:$0x1]
        %v743 = vperm.slane %v741, 0
        %v745 = vmul.f32 %v739, %v743
        %v746 = vmul.f32 %v740, %v743
        %v747 = vld [vmem:[%s3] sm:$0x1]
        %v749 = vperm.slane %v747, 0
        %v751 = vadd.f32 %v745, %v749
        %v752 = vadd.f32 %v746, %v749
        %v753 = vmax.f32 %v751, 0.0
        %v754 = vmax.f32 %v752, 0.0
        %vm755 = vcmp.lt.s32.totalorder %v615, 14
        %vm756 = vcmp.lt.s32.totalorder %v616, 14
        %v757 = vsel %vm755, %v753, 0.0
        %v758 = vsel %vm756, %v754, 0.0
        %v759 = vmax.f32 %v757, %v758
        %v760 = vrot.slane %v759, 4
        %v761 = vmax.f32 %v759, %v760
        %v762 = vrot.slane %v761, 2
        %v763 = vmax.f32 %v761, %v762
        %v764 = vrot.slane %v763, 1
        %v765 = vmax.f32 %v763, %v764
        %v766 = vpack.c.bf16 %v765, %v765
        %v767 = vld [vmem:[#allocation10] sm:$0xf]
        %v768 = vld [vmem:[#allocation10 + $0x4] sm:$0xf]
        %v769 = vld [vmem:[#allocation10 + $0x8] sm:$0xf]
        %v770 = vld [vmem:[#allocation10 + $0xc] sm:$0xf]
        %v771 = vld [vmem:[#allocation10 + $0x10] sm:$0xf]
        %v772 = vld [vmem:[#allocation10 + $0x14] sm:$0xf]
        %v773 = vld [vmem:[#allocation10 + $0x18] sm:$0xf]
        %v774 = vld [vmem:[#allocation10 + $0x1c] sm:$0xf]
        %v775 = vld [vmem:[#allocation10 + $0x20] sm:$0xf]
        %v776 = vld [vmem:[#allocation10 + $0x24] sm:$0xf]
        %v777 = vld [vmem:[#allocation10 + $0x28] sm:$0xf]
        %v778 = vld [vmem:[#allocation10 + $0x2c] sm:$0xf]
        %v779 = vld [vmem:[#allocation10 + $0x30] sm:$0xf]
        %v780 = vld [vmem:[#allocation10 + $0x34] sm:$0xf]
        %v781 = vld [vmem:[#allocation10 + $0x38] sm:$0xf]
        %v782 = vld [vmem:[#allocation10 + $0x3c] sm:$0xf]
        %v783 = vpack.c.bf16 %v753, %v753
        %v784 = vpack.c.bf16 %v754, %v754
        %v785 = vld [vmem:[#allocation7] sm:$0xf]
        %v786 = vld [vmem:[#allocation7 + $0x4] sm:$0xf]
        %v787 = vld [vmem:[#allocation7 + $0x8] sm:$0xf]
        %v788 = vld [vmem:[#allocation7 + $0xc] sm:$0xf]
        %v789 = vld [vmem:[#allocation7 + $0x10] sm:$0xf]
        %v790 = vld [vmem:[#allocation7 + $0x14] sm:$0xf]
        %v791 = vld [vmem:[#allocation7 + $0x18] sm:$0xf]
        %v792 = vld [vmem:[#allocation7 + $0x1c] sm:$0xf]
        %v793 = vld [vmem:[#allocation7 + $0x20] sm:$0xf]
        %v794 = vld [vmem:[#allocation7 + $0x24] sm:$0xf]
        %v795 = vld [vmem:[#allocation7 + $0x28] sm:$0xf]
        %v796 = vld [vmem:[#allocation7 + $0x2c] sm:$0xf]
        %v797 = vld [vmem:[#allocation7 + $0x30] sm:$0xf]
        %v798 = vld [vmem:[#allocation7 + $0x34] sm:$0xf]
        %v799 = vld [vmem:[#allocation7 + $0x38] sm:$0xf]
        %v800 = vld [vmem:[#allocation7 + $0x3c] sm:$0xf]
        %v803 = vunpack.c.l.b16 %v783
        %v804 = vunpack.c.l.b16 %v784
        %v805 = vpack.c.b16 %v804, %v803
        %v807 = vshrl.u32 %v805, 16
        %v809 = vshll.u32 %v805, 16
        %v811 = vrot.slane %v809, 1
        %v812 = vor.u32 %v807, %v811
        %v814 = vsel %vm636, %v812, 0
        %s815 = scalar_lea.vmem [#allocation7], 64
        %v816 = vld [vmem:[%s815] sm:$0xf]
        %v817 = vld [vmem:[%s815 + $0x4] sm:$0xf]
        %v818 = vld [vmem:[%s815 + $0x8] sm:$0xf]
        %v819 = vld [vmem:[%s815 + $0xc] sm:$0xf]
        %v820 = vld [vmem:[%s815 + $0x10] sm:$0xf]
        %v821 = vld [vmem:[%s815 + $0x14] sm:$0xf]
        %v822 = vld [vmem:[%s815 + $0x18] sm:$0xf]
        %v823 = vld [vmem:[%s815 + $0x1c] sm:$0xf]
        %v824 = vld [vmem:[%s815 + $0x20] sm:$0xf]
        %v825 = vld [vmem:[%s815 + $0x24] sm:$0xf]
        %v826 = vld [vmem:[%s815 + $0x28] sm:$0xf]
        %v827 = vld [vmem:[%s815 + $0x2c] sm:$0xf]
        %v828 = vld [vmem:[%s815 + $0x30] sm:$0xf]
        %v829 = vld [vmem:[%s815 + $0x34] sm:$0xf]
        %v830 = vld [vmem:[%s815 + $0x38] sm:$0xf]
        %v831 = vld [vmem:[%s815 + $0x3c] sm:$0xf]
        %v848 = vunpack.c.l.b16 %v816
        %v849 = vunpack.c.l.b16 %v817
        %v850 = vunpack.c.l.b16 %v818
        %v851 = vunpack.c.l.b16 %v819
        %v852 = vunpack.c.l.b16 %v820
        %v853 = vunpack.c.l.b16 %v821
        %v854 = vunpack.c.l.b16 %v822
        %v855 = vunpack.c.l.b16 %v823
        %v856 = vunpack.c.l.b16 %v824
        %v857 = vunpack.c.l.b16 %v825
        %v858 = vunpack.c.l.b16 %v826
        %v859 = vunpack.c.l.b16 %v827
        %v860 = vunpack.c.l.b16 %v828
        %v861 = vunpack.c.l.b16 %v829
        %v862 = vunpack.c.l.b16 %v830
        %v863 = vunpack.c.l.b16 %v831
        %v864 = vpack.c.b16 %v849, %v848
        %v865 = vpack.c.b16 %v851, %v850
        %v866 = vpack.c.b16 %v853, %v852
        %v867 = vpack.c.b16 %v855, %v854
        %v868 = vpack.c.b16 %v857, %v856
        %v869 = vpack.c.b16 %v859, %v858
        %v870 = vpack.c.b16 %v861, %v860
        %v871 = vpack.c.b16 %v863, %v862
        %880 = vmatpush.bf16.msra.mxu0 %v871
        %881 = vmatpush.bf16.msra.mxu0 %v870
        %882 = vmatpush.bf16.msra.mxu0 %v869
        %883 = vmatpush.bf16.msra.mxu0 %v868
        %884 = vmatpush.bf16.msra.mxu0 %v867
        %885 = vmatpush.bf16.msra.mxu0 %v866
        %886 = vmatpush.bf16.msra.mxu0 %v865
        %887 = vmatpush.bf16.msra.mxu0 %v864
        %888 = vmatmul.bf16.gmra.mxu0 %v814
        %v889 = vpop.f32.mrf.mxu0
        %v890 = vadd.f32 0.0, %v889
        %v891 = vpop.f32.mrf.mxu0
        %v892 = vadd.f32 0.0, %v891
        %893 = vdwg.mxu0
        %v911 = vunpack.c.l.b16 %v785
        %v912 = vunpack.c.l.b16 %v786
        %v913 = vunpack.c.l.b16 %v787
        %v914 = vunpack.c.l.b16 %v788
        %v915 = vunpack.c.l.b16 %v789
        %v916 = vunpack.c.l.b16 %v790
        %v917 = vunpack.c.l.b16 %v791
        %v918 = vunpack.c.l.b16 %v792
        %v919 = vunpack.c.l.b16 %v793
        %v920 = vunpack.c.l.b16 %v794
        %v921 = vunpack.c.l.b16 %v795
        %v922 = vunpack.c.l.b16 %v796
        %v923 = vunpack.c.l.b16 %v797
        %v924 = vunpack.c.l.b16 %v798
        %v925 = vunpack.c.l.b16 %v799
        %v926 = vunpack.c.l.b16 %v800
        %v927 = vpack.c.b16 %v912, %v911
        %v928 = vpack.c.b16 %v914, %v913
        %v929 = vpack.c.b16 %v916, %v915
        %v930 = vpack.c.b16 %v918, %v917
        %v931 = vpack.c.b16 %v920, %v919
        %v932 = vpack.c.b16 %v922, %v921
        %v933 = vpack.c.b16 %v924, %v923
        %v934 = vpack.c.b16 %v926, %v925
        %943 = vmatpush.bf16.msra.mxu0 %v934
        %944 = vmatpush.bf16.msra.mxu0 %v933
        %945 = vmatpush.bf16.msra.mxu0 %v932
        %946 = vmatpush.bf16.msra.mxu0 %v931
        %947 = vmatpush.bf16.msra.mxu0 %v930
        %948 = vmatpush.bf16.msra.mxu0 %v929
        %949 = vmatpush.bf16.msra.mxu0 %v928
        %950 = vmatpush.bf16.msra.mxu0 %v927
        %951 = vmatmul.bf16.gmra.mxu0 %v805
        %v952 = vpop.f32.mrf.mxu0
        %v953 = vadd.f32 %v890, %v952
        %v954 = vpop.f32.mrf.mxu0
        %v955 = vadd.f32 %v892, %v954
        %956 = vdwg.mxu0
        %v957 = vrot.slane %v805, 1
        %v959 = vsel %vm702, %v957, 0
        %s961 = scalar_lea.vmem [#allocation7], 128
        %v962 = vld [vmem:[%s961] sm:$0xf]
        %v963 = vld [vmem:[%s961 + $0x4] sm:$0xf]
        %v964 = vld [vmem:[%s961 + $0x8] sm:$0xf]
        %v965 = vld [vmem:[%s961 + $0xc] sm:$0xf]
        %v966 = vld [vmem:[%s961 + $0x10] sm:$0xf]
        %v967 = vld [vmem:[%s961 + $0x14] sm:$0xf]
        %v968 = vld [vmem:[%s961 + $0x18] sm:$0xf]
        %v969 = vld [vmem:[%s961 + $0x1c] sm:$0xf]
        %v970 = vld [vmem:[%s961 + $0x20] sm:$0xf]
        %v971 = vld [vmem:[%s961 + $0x24] sm:$0xf]
        %v972 = vld [vmem:[%s961 + $0x28] sm:$0xf]
        %v973 = vld [vmem:[%s961 + $0x2c] sm:$0xf]
        %v974 = vld [vmem:[%s961 + $0x30] sm:$0xf]
        %v975 = vld [vmem:[%s961 + $0x34] sm:$0xf]
        %v976 = vld [vmem:[%s961 + $0x38] sm:$0xf]
        %v977 = vld [vmem:[%s961 + $0x3c] sm:$0xf]
        %v994 = vunpack.c.l.b16 %v962
        %v995 = vunpack.c.l.b16 %v963
        %v996 = vunpack.c.l.b16 %v964
        %v997 = vunpack.c.l.b16 %v965
        %v998 = vunpack.c.l.b16 %v966
        %v999 = vunpack.c.l.b16 %v967
        %v1000 = vunpack.c.l.b16 %v968
        %v1001 = vunpack.c.l.b16 %v969
        %v1002 = vunpack.c.l.b16 %v970
        %v1003 = vunpack.c.l.b16 %v971
        %v1004 = vunpack.c.l.b16 %v972
        %v1005 = vunpack.c.l.b16 %v973
        %v1006 = vunpack.c.l.b16 %v974
        %v1007 = vunpack.c.l.b16 %v975
        %v1008 = vunpack.c.l.b16 %v976
        %v1009 = vunpack.c.l.b16 %v977
        %v1010 = vpack.c.b16 %v995, %v994
        %v1011 = vpack.c.b16 %v997, %v996
        %v1012 = vpack.c.b16 %v999, %v998
        %v1013 = vpack.c.b16 %v1001, %v1000
        %v1014 = vpack.c.b16 %v1003, %v1002
        %v1015 = vpack.c.b16 %v1005, %v1004
        %v1016 = vpack.c.b16 %v1007, %v1006
        %v1017 = vpack.c.b16 %v1009, %v1008
        %1026 = vmatpush.bf16.msra.mxu0 %v1017
        %1027 = vmatpush.bf16.msra.mxu0 %v1016
        %1028 = vmatpush.bf16.msra.mxu0 %v1015
        %1029 = vmatpush.bf16.msra.mxu0 %v1014
        %1030 = vmatpush.bf16.msra.mxu0 %v1013
        %1031 = vmatpush.bf16.msra.mxu0 %v1012
        %1032 = vmatpush.bf16.msra.mxu0 %v1011
        %1033 = vmatpush.bf16.msra.mxu0 %v1010
        %1034 = vmatmul.bf16.gmra.mxu0 %v959
        %v1035 = vpop.f32.mrf.mxu0
        %v1036 = vadd.f32 0.0, %v1035
        %v1037 = vpop.f32.mrf.mxu0
        %v1038 = vadd.f32 0.0, %v1037
        %1039 = vdwg.mxu0
        %v1040 = vadd.f32 %v953, %v1036
        %v1041 = vadd.f32 %v955, %v1038
        %v1042 = vld [vmem:[%s5] sm:$0x1]
        %v1044 = vperm.slane %v1042, 0
        %v1046 = vmul.f32 %v1040, %v1044
        %v1047 = vmul.f32 %v1041, %v1044
        %v1048 = vld [vmem:[%s6] sm:$0x1]
        %v1050 = vperm.slane %v1048, 0
        %v1052 = vadd.f32 %v1046, %v1050
        %v1053 = vadd.f32 %v1047, %v1050
        %v1054 = vmax.f32 %v1052, 0.0
        %v1055 = vmax.f32 %v1053, 0.0
        %vm1056 = vcmp.lt.s32.totalorder %v615, 12
        %vm1057 = vcmp.lt.s32.totalorder %v616, 12
        %v1058 = vsel %vm1056, %v1054, 0.0
        %v1059 = vsel %vm1057, %v1055, 0.0
        %v1060 = vmax.f32 %v1058, %v1059
        %v1061 = vrot.slane %v1060, 4
        %v1062 = vmax.f32 %v1060, %v1061
        %v1063 = vrot.slane %v1062, 2
        %v1064 = vmax.f32 %v1062, %v1063
        %v1065 = vrot.slane %v1064, 1
        %v1066 = vmax.f32 %v1064, %v1065
        %v1067 = vpack.c.bf16 %v1066, %v1066
        %v1068 = vld [vmem:[#allocation11] sm:$0xf]
        %v1069 = vld [vmem:[#allocation11 + $0x4] sm:$0xf]
        %v1070 = vld [vmem:[#allocation11 + $0x8] sm:$0xf]
        %v1071 = vld [vmem:[#allocation11 + $0xc] sm:$0xf]
        %v1072 = vld [vmem:[#allocation11 + $0x10] sm:$0xf]
        %v1073 = vld [vmem:[#allocation11 + $0x14] sm:$0xf]
        %v1074 = vld [vmem:[#allocation11 + $0x18] sm:$0xf]
        %v1075 = vld [vmem:[#allocation11 + $0x1c] sm:$0xf]
        %v1076 = vld [vmem:[#allocation11 + $0x20] sm:$0xf]
        %v1077 = vld [vmem:[#allocation11 + $0x24] sm:$0xf]
        %v1078 = vld [vmem:[#allocation11 + $0x28] sm:$0xf]
        %v1079 = vld [vmem:[#allocation11 + $0x2c] sm:$0xf]
        %v1080 = vld [vmem:[#allocation11 + $0x30] sm:$0xf]
        %v1081 = vld [vmem:[#allocation11 + $0x34] sm:$0xf]
        %v1082 = vld [vmem:[#allocation11 + $0x38] sm:$0xf]
        %v1083 = vld [vmem:[#allocation11 + $0x3c] sm:$0xf]
        %v1100 = vunpack.c.l.b16 %v1068
        %v1101 = vunpack.c.l.b16 %v1069
        %v1102 = vunpack.c.l.b16 %v1070
        %v1103 = vunpack.c.l.b16 %v1071
        %v1104 = vunpack.c.l.b16 %v1072
        %v1105 = vunpack.c.l.b16 %v1073
        %v1106 = vunpack.c.l.b16 %v1074
        %v1107 = vunpack.c.l.b16 %v1075
        %v1108 = vunpack.c.l.b16 %v1076
        %v1109 = vunpack.c.l.b16 %v1077
        %v1110 = vunpack.c.l.b16 %v1078
        %v1111 = vunpack.c.l.b16 %v1079
        %v1112 = vunpack.c.l.b16 %v1080
        %v1113 = vunpack.c.l.b16 %v1081
        %v1114 = vunpack.c.l.b16 %v1082
        %v1115 = vunpack.c.l.b16 %v1083
        %v1116 = vpack.c.b16 %v1101, %v1100
        %v1117 = vpack.c.b16 %v1103, %v1102
        %v1118 = vpack.c.b16 %v1105, %v1104
        %v1119 = vpack.c.b16 %v1107, %v1106
        %v1120 = vpack.c.b16 %v1109, %v1108
        %v1121 = vpack.c.b16 %v1111, %v1110
        %v1122 = vpack.c.b16 %v1113, %v1112
        %v1123 = vpack.c.b16 %v1115, %v1114
        %1132 = vmatpush.bf16.msra.mxu0 %v1123
        %1133 = vmatpush.bf16.msra.mxu0 %v1122
        %1134 = vmatpush.bf16.msra.mxu0 %v1121
        %1135 = vmatpush.bf16.msra.mxu0 %v1120
        %1136 = vmatpush.bf16.msra.mxu0 %v1119
        %1137 = vmatpush.bf16.msra.mxu0 %v1118
        %1138 = vmatpush.bf16.msra.mxu0 %v1117
        %1139 = vmatpush.bf16.msra.mxu0 %v1116
        %1140 = vmatmul.bf16.gmra.mxu0 %v1067
        %v1141 = vpop.f32.mrf.mxu0
        %v1142 = vadd.f32 0.0, %v1141
        %v1143 = vpop.f32.mrf.mxu0
        %1144 = vdwg.mxu0
        %v1161 = vunpack.c.l.b16 %v767
        %v1162 = vunpack.c.l.b16 %v768
        %v1163 = vunpack.c.l.b16 %v769
        %v1164 = vunpack.c.l.b16 %v770
        %v1165 = vunpack.c.l.b16 %v771
        %v1166 = vunpack.c.l.b16 %v772
        %v1167 = vunpack.c.l.b16 %v773
        %v1168 = vunpack.c.l.b16 %v774
        %v1169 = vunpack.c.l.b16 %v775
        %v1170 = vunpack.c.l.b16 %v776
        %v1171 = vunpack.c.l.b16 %v777
        %v1172 = vunpack.c.l.b16 %v778
        %v1173 = vunpack.c.l.b16 %v779
        %v1174 = vunpack.c.l.b16 %v780
        %v1175 = vunpack.c.l.b16 %v781
        %v1176 = vunpack.c.l.b16 %v782
        %v1177 = vpack.c.b16 %v1162, %v1161
        %v1178 = vpack.c.b16 %v1164, %v1163
        %v1179 = vpack.c.b16 %v1166, %v1165
        %v1180 = vpack.c.b16 %v1168, %v1167
        %v1181 = vpack.c.b16 %v1170, %v1169
        %v1182 = vpack.c.b16 %v1172, %v1171
        %v1183 = vpack.c.b16 %v1174, %v1173
        %v1184 = vpack.c.b16 %v1176, %v1175
        %1193 = vmatpush.bf16.msra.mxu0 %v1184
        %1194 = vmatpush.bf16.msra.mxu0 %v1183
        %1195 = vmatpush.bf16.msra.mxu0 %v1182
        %1196 = vmatpush.bf16.msra.mxu0 %v1181
        %1197 = vmatpush.bf16.msra.mxu0 %v1180
        %1198 = vmatpush.bf16.msra.mxu0 %v1179
        %1199 = vmatpush.bf16.msra.mxu0 %v1178
        %1200 = vmatpush.bf16.msra.mxu0 %v1177
        %1201 = vmatmul.bf16.gmra.mxu0 %v766
        %v1202 = vpop.f32.mrf.mxu0
        %v1203 = vadd.f32 %v1142, %v1202
        %v1204 = vpop.f32.mrf.mxu0
        %1205 = vdwg.mxu0
        %v1206 = vpack.c.bf16 %v1054, %v1054
        %v1207 = vpack.c.bf16 %v1055, %v1055
        %v1208 = vld [vmem:[#allocation8] sm:$0xf]
        %v1209 = vld [vmem:[#allocation8 + $0x4] sm:$0xf]
        %v1210 = vld [vmem:[#allocation8 + $0x8] sm:$0xf]
        %v1211 = vld [vmem:[#allocation8 + $0xc] sm:$0xf]
        %v1212 = vld [vmem:[#allocation8 + $0x10] sm:$0xf]
        %v1213 = vld [vmem:[#allocation8 + $0x14] sm:$0xf]
        %v1214 = vld [vmem:[#allocation8 + $0x18] sm:$0xf]
        %v1215 = vld [vmem:[#allocation8 + $0x1c] sm:$0xf]
        %v1216 = vld [vmem:[#allocation8 + $0x20] sm:$0xf]
        %v1217 = vld [vmem:[#allocation8 + $0x24] sm:$0xf]
        %v1218 = vld [vmem:[#allocation8 + $0x28] sm:$0xf]
        %v1219 = vld [vmem:[#allocation8 + $0x2c] sm:$0xf]
        %v1220 = vld [vmem:[#allocation8 + $0x30] sm:$0xf]
        %v1221 = vld [vmem:[#allocation8 + $0x34] sm:$0xf]
        %v1222 = vld [vmem:[#allocation8 + $0x38] sm:$0xf]
        %v1223 = vld [vmem:[#allocation8 + $0x3c] sm:$0xf]
        %v1226 = vunpack.c.l.b16 %v1206
        %v1227 = vunpack.c.l.b16 %v1207
        %v1228 = vpack.c.b16 %v1227, %v1226
        %v1230 = vshrl.u32 %v1228, 16
        %v1232 = vshll.u32 %v1228, 16
        %v1234 = vrot.slane %v1232, 1
        %v1235 = vor.u32 %v1230, %v1234
        %v1237 = vsel %vm636, %v1235, 0
        %s1238 = scalar_lea.vmem [#allocation8], 64
        %v1239 = vld [vmem:[%s1238] sm:$0xf]
        %v1240 = vld [vmem:[%s1238 + $0x4] sm:$0xf]
        %v1241 = vld [vmem:[%s1238 + $0x8] sm:$0xf]
        %v1242 = vld [vmem:[%s1238 + $0xc] sm:$0xf]
        %v1243 = vld [vmem:[%s1238 + $0x10] sm:$0xf]
        %v1244 = vld [vmem:[%s1238 + $0x14] sm:$0xf]
        %v1245 = vld [vmem:[%s1238 + $0x18] sm:$0xf]
        %v1246 = vld [vmem:[%s1238 + $0x1c] sm:$0xf]
        %v1247 = vld [vmem:[%s1238 + $0x20] sm:$0xf]
        %v1248 = vld [vmem:[%s1238 + $0x24] sm:$0xf]
        %v1249 = vld [vmem:[%s1238 + $0x28] sm:$0xf]
        %v1250 = vld [vmem:[%s1238 + $0x2c] sm:$0xf]
        %v1251 = vld [vmem:[%s1238 + $0x30] sm:$0xf]
        %v1252 = vld [vmem:[%s1238 + $0x34] sm:$0xf]
        %v1253 = vld [vmem:[%s1238 + $0x38] sm:$0xf]
        %v1254 = vld [vmem:[%s1238 + $0x3c] sm:$0xf]
        %v1271 = vunpack.c.l.b16 %v1239
        %v1272 = vunpack.c.l.b16 %v1240
        %v1273 = vunpack.c.l.b16 %v1241
        %v1274 = vunpack.c.l.b16 %v1242
        %v1275 = vunpack.c.l.b16 %v1243
        %v1276 = vunpack.c.l.b16 %v1244
        %v1277 = vunpack.c.l.b16 %v1245
        %v1278 = vunpack.c.l.b16 %v1246
        %v1279 = vunpack.c.l.b16 %v1247
        %v1280 = vunpack.c.l.b16 %v1248
        %v1281 = vunpack.c.l.b16 %v1249
        %v1282 = vunpack.c.l.b16 %v1250
        %v1283 = vunpack.c.l.b16 %v1251
        %v1284 = vunpack.c.l.b16 %v1252
        %v1285 = vunpack.c.l.b16 %v1253
        %v1286 = vunpack.c.l.b16 %v1254
        %v1287 = vpack.c.b16 %v1272, %v1271
        %v1288 = vpack.c.b16 %v1274, %v1273
        %v1289 = vpack.c.b16 %v1276, %v1275
        %v1290 = vpack.c.b16 %v1278, %v1277
        %v1291 = vpack.c.b16 %v1280, %v1279
        %v1292 = vpack.c.b16 %v1282, %v1281
        %v1293 = vpack.c.b16 %v1284, %v1283
        %v1294 = vpack.c.b16 %v1286, %v1285
        %1303 = vmatpush.bf16.msra.mxu0 %v1294
        %1304 = vmatpush.bf16.msra.mxu0 %v1293
        %1305 = vmatpush.bf16.msra.mxu0 %v1292
        %1306 = vmatpush.bf16.msra.mxu0 %v1291
        %1307 = vmatpush.bf16.msra.mxu0 %v1290
        %1308 = vmatpush.bf16.msra.mxu0 %v1289
        %1309 = vmatpush.bf16.msra.mxu0 %v1288
        %1310 = vmatpush.bf16.msra.mxu0 %v1287
        %1311 = vmatmul.bf16.gmra.mxu0 %v1237
        %v1312 = vpop.f32.mrf.mxu0
        %v1313 = vadd.f32 0.0, %v1312
        %v1314 = vpop.f32.mrf.mxu0
        %v1315 = vadd.f32 0.0, %v1314
        %1316 = vdwg.mxu0
        %v1334 = vunpack.c.l.b16 %v1208
        %v1335 = vunpack.c.l.b16 %v1209
        %v1336 = vunpack.c.l.b16 %v1210
        %v1337 = vunpack.c.l.b16 %v1211
        %v1338 = vunpack.c.l.b16 %v1212
        %v1339 = vunpack.c.l.b16 %v1213
        %v1340 = vunpack.c.l.b16 %v1214
        %v1341 = vunpack.c.l.b16 %v1215
        %v1342 = vunpack.c.l.b16 %v1216
        %v1343 = vunpack.c.l.b16 %v1217
        %v1344 = vunpack.c.l.b16 %v1218
        %v1345 = vunpack.c.l.b16 %v1219
        %v1346 = vunpack.c.l.b16 %v1220
        %v1347 = vunpack.c.l.b16 %v1221
        %v1348 = vunpack.c.l.b16 %v1222
        %v1349 = vunpack.c.l.b16 %v1223
        %v1350 = vpack.c.b16 %v1335, %v1334
        %v1351 = vpack.c.b16 %v1337, %v1336
        %v1352 = vpack.c.b16 %v1339, %v1338
        %v1353 = vpack.c.b16 %v1341, %v1340
        %v1354 = vpack.c.b16 %v1343, %v1342
        %v1355 = vpack.c.b16 %v1345, %v1344
        %v1356 = vpack.c.b16 %v1347, %v1346
        %v1357 = vpack.c.b16 %v1349, %v1348
        %1366 = vmatpush.bf16.msra.mxu0 %v1357
        %1367 = vmatpush.bf16.msra.mxu0 %v1356
        %1368 = vmatpush.bf16.msra.mxu0 %v1355
        %1369 = vmatpush.bf16.msra.mxu0 %v1354
        %1370 = vmatpush.bf16.msra.mxu0 %v1353
        %1371 = vmatpush.bf16.msra.mxu0 %v1352
        %1372 = vmatpush.bf16.msra.mxu0 %v1351
        %1373 = vmatpush.bf16.msra.mxu0 %v1350
        %1374 = vmatmul.bf16.gmra.mxu0 %v1228
        %v1375 = vpop.f32.mrf.mxu0
        %v1376 = vadd.f32 %v1313, %v1375
        %v1377 = vpop.f32.mrf.mxu0
        %v1378 = vadd.f32 %v1315, %v1377
        %1379 = vdwg.mxu0
        %v1380 = vrot.slane %v1228, 1
        %v1382 = vsel %vm702, %v1380, 0
        %s1384 = scalar_lea.vmem [#allocation8], 128
        %v1385 = vld [vmem:[%s1384] sm:$0xf]
        %v1386 = vld [vmem:[%s1384 + $0x4] sm:$0xf]
        %v1387 = vld [vmem:[%s1384 + $0x8] sm:$0xf]
        %v1388 = vld [vmem:[%s1384 + $0xc] sm:$0xf]
        %v1389 = vld [vmem:[%s1384 + $0x10] sm:$0xf]
        %v1390 = vld [vmem:[%s1384 + $0x14] sm:$0xf]
        %v1391 = vld [vmem:[%s1384 + $0x18] sm:$0xf]
        %v1392 = vld [vmem:[%s1384 + $0x1c] sm:$0xf]
        %v1393 = vld [vmem:[%s1384 + $0x20] sm:$0xf]
        %v1394 = vld [vmem:[%s1384 + $0x24] sm:$0xf]
        %v1395 = vld [vmem:[%s1384 + $0x28] sm:$0xf]
        %v1396 = vld [vmem:[%s1384 + $0x2c] sm:$0xf]
        %v1397 = vld [vmem:[%s1384 + $0x30] sm:$0xf]
        %v1398 = vld [vmem:[%s1384 + $0x34] sm:$0xf]
        %v1399 = vld [vmem:[%s1384 + $0x38] sm:$0xf]
        %v1400 = vld [vmem:[%s1384 + $0x3c] sm:$0xf]
        %v1417 = vunpack.c.l.b16 %v1385
        %v1418 = vunpack.c.l.b16 %v1386
        %v1419 = vunpack.c.l.b16 %v1387
        %v1420 = vunpack.c.l.b16 %v1388
        %v1421 = vunpack.c.l.b16 %v1389
        %v1422 = vunpack.c.l.b16 %v1390
        %v1423 = vunpack.c.l.b16 %v1391
        %v1424 = vunpack.c.l.b16 %v1392
        %v1425 = vunpack.c.l.b16 %v1393
        %v1426 = vunpack.c.l.b16 %v1394
        %v1427 = vunpack.c.l.b16 %v1395
        %v1428 = vunpack.c.l.b16 %v1396
        %v1429 = vunpack.c.l.b16 %v1397
        %v1430 = vunpack.c.l.b16 %v1398
        %v1431 = vunpack.c.l.b16 %v1399
        %v1432 = vunpack.c.l.b16 %v1400
        %v1433 = vpack.c.b16 %v1418, %v1417
        %v1434 = vpack.c.b16 %v1420, %v1419
        %v1435 = vpack.c.b16 %v1422, %v1421
        %v1436 = vpack.c.b16 %v1424, %v1423
        %v1437 = vpack.c.b16 %v1426, %v1425
        %v1438 = vpack.c.b16 %v1428, %v1427
        %v1439 = vpack.c.b16 %v1430, %v1429
        %v1440 = vpack.c.b16 %v1432, %v1431
        %1449 = vmatpush.bf16.msra.mxu0 %v1440
        %1450 = vmatpush.bf16.msra.mxu0 %v1439
        %1451 = vmatpush.bf16.msra.mxu0 %v1438
        %1452 = vmatpush.bf16.msra.mxu0 %v1437
        %1453 = vmatpush.bf16.msra.mxu0 %v1436
        %1454 = vmatpush.bf16.msra.mxu0 %v1435
        %1455 = vmatpush.bf16.msra.mxu0 %v1434
        %1456 = vmatpush.bf16.msra.mxu0 %v1433
        %1457 = vmatmul.bf16.gmra.mxu0 %v1382
        %v1458 = vpop.f32.mrf.mxu0
        %v1459 = vadd.f32 0.0, %v1458
        %v1460 = vpop.f32.mrf.mxu0
        %v1461 = vadd.f32 0.0, %v1460
        %1462 = vdwg.mxu0
        %v1463 = vadd.f32 %v1376, %v1459
        %v1464 = vadd.f32 %v1378, %v1461
        %v1465 = vld [vmem:[%s8] sm:$0x1]
        %v1467 = vperm.slane %v1465, 0
        %v1469 = vmul.f32 %v1463, %v1467
        %v1470 = vmul.f32 %v1464, %v1467
        %v1471 = vld [vmem:[%s9] sm:$0x1]
        %v1473 = vperm.slane %v1471, 0
        %v1475 = vadd.f32 %v1469, %v1473
        %v1476 = vadd.f32 %v1470, %v1473
        %v1477 = vmax.f32 %v1475, 0.0
        %v1478 = vmax.f32 %v1476, 0.0
        %vm1479 = vcmp.lt.s32.totalorder %v615, 10
        %vm1480 = vcmp.lt.s32.totalorder %v616, 10
        %v1481 = vsel %vm1479, %v1477, 0.0
        %v1482 = vsel %vm1480, %v1478, 0.0
        %v1483 = vmax.f32 %v1481, %v1482
        %v1484 = vrot.slane %v1483, 4
        %v1485 = vmax.f32 %v1483, %v1484
        %v1486 = vrot.slane %v1485, 2
        %v1487 = vmax.f32 %v1485, %v1486
        %v1488 = vrot.slane %v1487, 1
        %v1489 = vmax.f32 %v1487, %v1488
        %v1490 = vpack.c.bf16 %v1489, %v1489
        %v1491 = vld [vmem:[#allocation13] sm:$0xf]
        %v1492 = vld [vmem:[#allocation13 + $0x4] sm:$0xf]
        %v1493 = vld [vmem:[#allocation13 + $0x8] sm:$0xf]
        %v1494 = vld [vmem:[#allocation13 + $0xc] sm:$0xf]
        %v1495 = vld [vmem:[#allocation13 + $0x10] sm:$0xf]
        %v1496 = vld [vmem:[#allocation13 + $0x14] sm:$0xf]
        %v1497 = vld [vmem:[#allocation13 + $0x18] sm:$0xf]
        %v1498 = vld [vmem:[#allocation13 + $0x1c] sm:$0xf]
        %v1499 = vld [vmem:[#allocation13 + $0x20] sm:$0xf]
        %v1500 = vld [vmem:[#allocation13 + $0x24] sm:$0xf]
        %v1501 = vld [vmem:[#allocation13 + $0x28] sm:$0xf]
        %v1502 = vld [vmem:[#allocation13 + $0x2c] sm:$0xf]
        %v1503 = vld [vmem:[#allocation13 + $0x30] sm:$0xf]
        %v1504 = vld [vmem:[#allocation13 + $0x34] sm:$0xf]
        %v1505 = vld [vmem:[#allocation13 + $0x38] sm:$0xf]
        %v1506 = vld [vmem:[#allocation13 + $0x3c] sm:$0xf]
        %v1523 = vunpack.c.l.b16 %v1491
        %v1524 = vunpack.c.l.b16 %v1492
        %v1525 = vunpack.c.l.b16 %v1493
        %v1526 = vunpack.c.l.b16 %v1494
        %v1527 = vunpack.c.l.b16 %v1495
        %v1528 = vunpack.c.l.b16 %v1496
        %v1529 = vunpack.c.l.b16 %v1497
        %v1530 = vunpack.c.l.b16 %v1498
        %v1531 = vunpack.c.l.b16 %v1499
        %v1532 = vunpack.c.l.b16 %v1500
        %v1533 = vunpack.c.l.b16 %v1501
        %v1534 = vunpack.c.l.b16 %v1502
        %v1535 = vunpack.c.l.b16 %v1503
        %v1536 = vunpack.c.l.b16 %v1504
        %v1537 = vunpack.c.l.b16 %v1505
        %v1538 = vunpack.c.l.b16 %v1506
        %v1539 = vpack.c.b16 %v1524, %v1523
        %v1540 = vpack.c.b16 %v1526, %v1525
        %v1541 = vpack.c.b16 %v1528, %v1527
        %v1542 = vpack.c.b16 %v1530, %v1529
        %v1543 = vpack.c.b16 %v1532, %v1531
        %v1544 = vpack.c.b16 %v1534, %v1533
        %v1545 = vpack.c.b16 %v1536, %v1535
        %v1546 = vpack.c.b16 %v1538, %v1537
        %1555 = vmatpush.bf16.msra.mxu0 %v1546
        %1556 = vmatpush.bf16.msra.mxu0 %v1545
        %1557 = vmatpush.bf16.msra.mxu0 %v1544
        %1558 = vmatpush.bf16.msra.mxu0 %v1543
        %1559 = vmatpush.bf16.msra.mxu0 %v1542
        %1560 = vmatpush.bf16.msra.mxu0 %v1541
        %1561 = vmatpush.bf16.msra.mxu0 %v1540
        %1562 = vmatpush.bf16.msra.mxu0 %v1539
        %1563 = vmatmul.bf16.gmra.mxu0 %v1490
        %v1564 = vpop.f32.mrf.mxu0
        %v1565 = vadd.f32 0.0, %v1564
        %v1566 = vpop.f32.mrf.mxu0
        %1567 = vdwg.mxu0
        %v1568 = vadd.f32 %v1203, %v1565
        %v1569 = vld [vmem:[%s13] sm:$0x1]
        %v1570 = vadd.f32 %v1568, %v1569
        %1571 = vst [vmem:[%s585] sm:$0x1] %v1570
        %s1572 = sand.u32 %s341, 1
        %s1573 = scalar_lea.sflag [#allocation4], %s1572
        %s1574 = sand.u32 %s341, 1
        %s1575 = scalar_lea.vmem [#allocation14], %s1574
        // Predicated region
        $region105: #{tpu_custom_call.1} parent=75 // pred_check
          %p1576 = pneg %p351
        $region106: #{tpu_custom_call.1} parent=75 // pred_check_branch
          %1578 = sbr.rel (%p1576) target = $region108
        $region107: #{tpu_custom_call.1} parent=75 // pred_region
          %1580 = vsyncadd %s1573, 0
          %s1581 = scalar_lea.hbm %s14, %s34
          %s1583 = sshll.u32 %s1575, 4
          %s1584 = int_to_ptr.vmem [resolvable:$true] %s1583
          %s1585 = sshll.u32 %s1581, 4
          %s1586 = int_to_ptr.hbm [resolvable:$true] %s1585
          %1588 = dma.vmem_to_hbm [thread:$0]  %s1584, 16, %s1586, %s1573
        $region108: #{tpu_custom_call.1} parent=75 // pred_fallthru
          _
      $region76: #{tpu_custom_call.1} parent=5 // pred_fallthru
        _
      %p1589 = scmp.le.s32.totalorder 2, %s29
      // Predicated region
      $region109: #{tpu_custom_call.1} parent=5 // pred_check
        %p1590 = pneg %p1589
      $region110: #{tpu_custom_call.1} parent=5 // pred_check_branch
        %1592 = sbr.rel (%p1590) target = $region112
      $region111: #{tpu_custom_call.1} parent=5 // pred_region
        %s1593 = ssub.s32 %s29, 2
        // Predicated region
        $region113: #{tpu_custom_call.1} parent=111 // pred_check
          %p1594 = pneg %p357
        $region114: #{tpu_custom_call.1} parent=111 // pred_check_branch
          %1596 = sbr.rel (%p1594) target = $region116
        $region115: #{tpu_custom_call.1} parent=111 // pred_region
          %s1597 = sand.u32 %s342, 1
          %s1598 = scalar_lea.sflag [#allocation4], %s1597
          %s1599 = sand.u32 %s342, 1
          %s1600 = scalar_lea.vmem [#allocation14], %s1599
          %1602 = dma.done %s1598, 16
        $region116: #{tpu_custom_call.1} parent=111 // pred_fallthru
          _
      $region112: #{tpu_custom_call.1} parent=5 // pred_fallthru
        _
    $region6: #{tpu_custom_call.1} parent=1 // loop_footer
      %s33 = sadd.s32 1, %s29
    $region7: #{tpu_custom_call.1} parent=1 // loop_footer_branch
      %28 = sbr.rel target = $region3
    $region8: #{tpu_custom_call.1} parent=1 // loop_exit
      _
    %1603 = vsyncpa [#allocation3], 1
    %s1604 = scalar_lea.sflag [#allocation3], 1
    %1605 = vsyncpa %s1604, 1
    %1606 = vsyncpa [#allocation6], 1
    %1607 = vsyncpa [#allocation9], 1
    %1608 = vsyncpa [#allocation12], 1
    %1609 = vsyncpa [#allocation4], 1
    %s1610 = scalar_lea.sflag [#allocation4], 1
    %1611 = vsyncpa %s1610, 1

</llo_original>
